<compile_context>
chip_gen: v6e
topology: v6e:2x2x1
jax: 0.10.0
libtpu: 0.0.40
codegen_flags: <defaults>
</compile_context>

<pallas_src>
import functools

import numpy as np
import jax
import jax.numpy as jnp
from jax.experimental import pallas as pl
from jax.experimental.pallas import tpu as pltpu


def _round_up(n, m):
    return ((n + m - 1) // m) * m


def _volume_norm_kernel(vol_const, pts_ref, gcat_ref, vxyt_ref, vxtp_ref,
                        sxyt_ref, sg_ref, out_ref):
    """One batch tile.  pts_ref / out_ref: (3, BT, PP) coordinate-stacked,
    batch-major, lane-padded points.  vol_const is a closed-over float."""
    f32 = jnp.float32
    TP = gcat_ref.shape[1] // 3
    BT = pts_ref.shape[1]
    PP = pts_ref.shape[2]

    def dot(a, b):
        return jnp.dot(a, b, preferred_element_type=f32)

    gcat = gcat_ref[...]        # (PP, 3*TP)  fused one-hot gathers (tri vert 0|1|2)
    vxyt = vxyt_ref[...]        # (TP, NXYP)  vertices_face_xy^T (padded)
    vxtp = vxtp_ref[...]        # (TP, NXYP)  vertices_face_x^T, cols >= N1 zero
    sxyt = sxyt_ref[...]        # (NXYP, PP)  one-hot scatter onto idx1 ++ idx2
    sg = sg_ref[...]            # (NXYP, 3*TP) scatter-then-gather delta matrix

    pts = pts_ref[...]          # (3, BT, PP)
    xr, yr, zr = pts[0], pts[1], pts[2]

    # --- single fused gather over all three coordinates (M = 3*BT) ---------
    g_all = dot(pts.reshape(3 * BT, PP), gcat)          # (3*BT, 3*TP)

    def split3(g):              # (BT, 3*TP) -> per-triangle-vertex values
        return g[:, :TP], g[:, TP:2 * TP], g[:, 2 * TP:]

    x0, x1, x2 = split3(g_all[:BT])
    y0, y1, y2 = split3(g_all[BT:2 * BT])
    z0, z1, z2 = split3(g_all[2 * BT:])

    # a = (volume_const - volume_2_y(current mesh)) / 3        -> (BT, 1)
    det_y = ((x0 - x1) * (z2 - z1) - (z0 - z1) * (x2 - x1)) * (1.0 / 6.0)
    vol_y = jnp.sum((y0 + y1 + y2) * det_y, axis=1, keepdims=True)
    a = (vol_const - vol_y) * (1.0 / 3.0)

    # ---- x correction (get_coeff_x) ----
    det_x = ((y1 - y0) * (z2 - z0) - (z1 - z0) * (y2 - y0)) * (1.0 / 6.0)
    coeffx = dot(det_x, vxyt)                                     # (BT, NXYP)
    defx = coeffx * (a / jnp.sum(coeffx * coeffx, axis=1, keepdims=True))
    xr = xr + dot(defx, sxyt)                                     # (BT, PP)
    dgx = dot(defx, sg)         # delta on gathered x-values: K = NXYP << PP
    x0 = x0 + dgx[:, :TP]
    x1 = x1 + dgx[:, TP:2 * TP]
    x2 = x2 + dgx[:, 2 * TP:]

    # ---- y correction (get_coeff_y) ----
    det_y2 = ((x0 - x1) * (z2 - z1) - (z0 - z1) * (x2 - x1)) * (1.0 / 6.0)
    coeffy = dot(det_y2, vxtp)       # zero past col N1 -> sxyt scatter is exact
    defy = coeffy * (a / jnp.sum(coeffy * coeffy, axis=1, keepdims=True))
    yr = yr + dot(defy, sxyt)
    dgy = dot(defy, sg)
    y0 = y0 + dgy[:, :TP]
    y1 = y1 + dgy[:, TP:2 * TP]
    y2 = y2 + dgy[:, 2 * TP:]

    # ---- z correction (get_coeff_z) ----
    det_z = ((x0 - x2) * (y1 - y2) - (y0 - y2) * (x1 - x2)) * (1.0 / 6.0)
    coeffz = dot(det_z, vxyt)
    defz = coeffz * (a / jnp.sum(coeffz * coeffz, axis=1, keepdims=True))
    zr = zr + dot(defz, sxyt)

    # full (BT, PP) aligned stores, no masked partial writes.
    out_ref[0] = xr
    out_ref[1] = yr
    out_ref[2] = zr


def build_volume_normalizer(temp_zero, newtriangles_zero, vertices_face_x,
                            vertices_face_xy, local_indices_1, local_indices_2,
                            batch_tile=None):
    """Precompute mesh-topology constants once; return jitted forward(x, y)."""
    idx1 = jnp.asarray(local_indices_1, jnp.int32)
    idx2 = jnp.asarray(local_indices_2, jnp.int32)
    N1 = int(idx1.shape[0])
    N2 = int(idx2.shape[0])
    NXY = N1 + N2
    idx12 = jnp.concatenate([idx1, idx2])

    points_zero = jnp.asarray(temp_zero, jnp.float32)       # (P, 3)
    tri = jnp.asarray(newtriangles_zero, jnp.int32)         # (T, 3)
    P = int(points_zero.shape[0])
    T = int(tri.shape[0])

    PP = _round_up(P, 128)
    TP = _round_up(T, 128)
    NXYP = _round_up(NXY, 128)

    # volume_2_x of the undeformed template mesh -> build-time Python float.
    tv = points_zero[tri]                                    # (T, 3, 3)
    det_x0 = ((tv[:, 1, 1] - tv[:, 0, 1]) * (tv[:, 2, 2] - tv[:, 0, 2])
              - (tv[:, 1, 2] - tv[:, 0, 2]) * (tv[:, 2, 1] - tv[:, 0, 1])) / 6.0
    vol_const = float(jnp.sum((tv[:, 0, 0] + tv[:, 1, 0] + tv[:, 2, 0]) * det_x0))

    # fused one-hot gather matrix (PP, 3*TP); padded tris (-1) -> zero columns.
    tri_pad = jnp.full((TP, 3), -1, jnp.int32).at[:T].set(tri)
    gcat = jnp.concatenate(
        [jax.nn.one_hot(tri_pad[:, k], PP, dtype=jnp.float32).T for k in range(3)],
        axis=1)                                              # (PP, 3*TP)

    # incidence matrices, transposed + zero padded to a shared (TP, NXYP).
    vxyt = jnp.zeros((TP, NXYP), jnp.float32).at[:T, :NXY].set(
        jnp.asarray(vertices_face_xy, jnp.float32).T)
    vxtp = jnp.zeros((TP, NXYP), jnp.float32).at[:T, :N1].set(
        jnp.asarray(vertices_face_x, jnp.float32).T)

    # one-hot scatter onto idx1 ++ idx2 (shared by the x/y/z corrections).
    idx12_pad = jnp.full((NXYP,), -1, jnp.int32).at[:NXY].set(idx12)
    sxyt = jax.nn.one_hot(idx12_pad, PP, dtype=jnp.float32)  # (NXYP, PP)

    # scatter-then-gather delta matrix: gather(scatter(def)) == dot(def, SG).
    sg = jnp.dot(sxyt, gcat, preferred_element_type=jnp.float32)  # (NXYP, 3*TP)

    # pre-transposed, lane-padded template coordinates (3, PP) — avoids any
    # last-dim-3 transpose at call time.
    tz = jnp.zeros((3, PP), jnp.float32).at[:, :P].set(points_zero.T)

    kernel = functools.partial(_volume_norm_kernel, vol_const)

    # ----- generation-aware tuning knobs (robust fallbacks) -----
    try:
        device_kind = jax.devices()[0].device_kind.lower()
    except Exception:
        device_kind = ""
    try:
        vmem_limit = int(pltpu.get_tpu_info().vmem_capacity_bytes * 0.8)
    except Exception:
        vmem_limit = 64 * 1024 * 1024   # conservative: fits every generation

    def forward(x, y):
        B = x.shape[0]
        if batch_tile is not None:
            BT = max(8, _round_up(int(batch_tile), 8))
        else:
            bt_cap = 256 if "v6" in device_kind else 128   # v6e MXU is 256-wide
            BT = min(bt_cap, _round_up(B, 8))
            if "v7" in device_kind and B > 8:
                # ensure >= 2 grid steps so both v7x TensorCores get work
                BT = min(BT, max(8, _round_up(_round_up(B, 8) // 2, 8)))
        BP = _round_up(B, BT)

        xin = x.reshape(B, N1, 3).astype(jnp.float32)
        yin = y.reshape(B, N2, 2).astype(jnp.float32)

        # Build points directly in coordinate-major, batch-major, lane-padded
        # layout.  Padded batch rows keep the template geometry so they never
        # divide by zero; scatter order (idx2 then idx1) matches torch.
        cx = jnp.tile(tz[0][None, :], (BP, 1))               # (BP, PP)
        cy = jnp.tile(tz[1][None, :], (BP, 1))
        cz = jnp.tile(tz[2][None, :], (BP, 1))
        cx = cx.at[:B, idx2].set(yin[:, :, 0])
        cz = cz.at[:B, idx2].set(yin[:, :, 1])
        cx = cx.at[:B, idx1].set(xin[:, :, 0])
        cy = cy.at[:B, idx1].set(xin[:, :, 1])
        cz = cz.at[:B, idx1].set(xin[:, :, 2])
        pts = jnp.stack([cx, cy, cz], axis=0)                # (3, BP, PP)

        out = pl.pallas_call(
            kernel,
            out_shape=jax.ShapeDtypeStruct((3, BP, PP), jnp.float32),
            grid=(BP // BT,),
            in_specs=[
                pl.BlockSpec((3, BT, PP), lambda b: (0, b, 0)),
                pl.BlockSpec((PP, 3 * TP), lambda b: (0, 0)),
                pl.BlockSpec((TP, NXYP), lambda b: (0, 0)),
                pl.BlockSpec((TP, NXYP), lambda b: (0, 0)),
                pl.BlockSpec((NXYP, PP), lambda b: (0, 0)),
                pl.BlockSpec((NXYP, 3 * TP), lambda b: (0, 0)),
            ],
            out_specs=pl.BlockSpec((3, BT, PP), lambda b: (0, b, 0)),
            compiler_params=pltpu.CompilerParams(
                dimension_semantics=("parallel",),
                vmem_limit_bytes=vmem_limit),
        )(pts, gcat, vxyt, vxtp, sxyt, sg)

        # gather outputs from the coordinate-major layout (no big transpose).
        ox = out[0, :B]
        oy = out[1, :B]
        oz = out[2, :B]
        out1 = jnp.stack([ox[:, idx1], oy[:, idx1], oz[:, idx1]], axis=-1)
        out2 = jnp.stack([ox[:, idx2], oz[:, idx2]], axis=-1)
        return out1, out2

    return jax.jit(forward)


# ---------------- pure-JAX reference (mirrors the torch code) ----------------
def _vol2y(M):
    det = ((M[..., 0, 0] - M[..., 1, 0]) * (M[..., 2, 2] - M[..., 1, 2])
           - (M[..., 0, 2] - M[..., 1, 2]) * (M[..., 2, 0] - M[..., 1, 0])) / 6.0
    return jnp.sum(jnp.sum(M[..., :, 1], axis=-1) * det, axis=-1)


def _vol2x(M):
    det = ((M[..., 1, 1] - M[..., 0, 1]) * (M[..., 2, 2] - M[..., 0, 2])
           - (M[..., 1, 2] - M[..., 0, 2]) * (M[..., 2, 1] - M[..., 0, 1])) / 6.0
    return jnp.sum(jnp.sum(M[..., :, 0], axis=-1) * det, axis=-1)


def _reference_forward(x, y, temp_zero, tri, Vx, Vxy, idx1, idx2):
    B = x.shape[0]
    idx12 = jnp.concatenate([idx1, idx2])
    xr = x.reshape(B, -1, 3)
    yr = y.reshape(B, -1, 2)
    pz = temp_zero.astype(jnp.float32)
    vol_const = _vol2x(pz[tri][None])[0]
    p2 = jnp.tile(pz[None], (B, 1, 1))
    p2 = p2.at[:, idx2, 0].set(yr[:, :, 0])
    p2 = p2.at[:, idx2, 2].set(yr[:, :, 1])
    p2 = p2.at[:, idx1, :].set(xr)
    a = ((vol_const - _vol2y(p2[:, tri])) / 3.0)[:, None]

    tv = p2[:, tri]
    detX = ((tv[..., 1, 1] - tv[..., 0, 1]) * (tv[..., 2, 2] - tv[..., 0, 2])
            - (tv[..., 1, 2] - tv[..., 0, 2]) * (tv[..., 2, 1] - tv[..., 0, 1])) / 6.0
    coeffx = detX @ Vxy.T
    defx = coeffx * a / jnp.sum(coeffx ** 2, axis=-1, keepdims=True)
    p2 = p2.at[:, idx12, 0].add(defx)

    tv = p2[:, tri]
    detY = ((tv[..., 0, 0] - tv[..., 1, 0]) * (tv[..., 2, 2] - tv[..., 1, 2])
            - (tv[..., 0, 2] - tv[..., 1, 2]) * (tv[..., 2, 0] - tv[..., 1, 0])) / 6.0
    coeffy = detY @ Vx.T
    defy = coeffy * a / jnp.sum(coeffy ** 2, axis=-1, keepdims=True)
    p2 = p2.at[:, idx1, 1].add(defy)

    tv = p2[:, tri]
    detZ = ((tv[..., 0, 0] - tv[..., 2, 0]) * (tv[..., 1, 1] - tv[..., 2, 1])
            - (tv[..., 0, 1] - tv[..., 2, 1]) * (tv[..., 1, 0] - tv[..., 2, 0])) / 6.0
    coeffz = detZ @ Vxy.T
    defz = coeffz * a / jnp.sum(coeffz ** 2, axis=-1, keepdims=True)
    p2 = p2.at[:, idx12, 2].add(defz)

    out1 = p2[:, idx1, :]
    out2 = jnp.stack([p2[:, idx2, 0], p2[:, idx2, 2]], axis=-1)
    return out1, out2


if __name__ == "__main__":
    # small synthetic surface mesh: unit cube, 8 vertices, 12 triangles.
    verts = np.array([
        [0., 0., 0.], [1., 0., 0.], [1., 1., 0.], [0., 1., 0.],
        [0., 0., 1.], [1., 0., 1.], [1., 1., 1.], [0., 1., 1.]],
        dtype=np.float32)
    tris = np.array([
        [0, 2, 1], [0, 3, 2],        # z = 0
        [4, 5, 6], [4, 6, 7],        # z = 1
        [0, 1, 5], [0, 5, 4],        # y = 0
        [2, 3, 7], [2, 7, 6],        # y = 1
        [0, 4, 7], [0, 7, 3],        # x = 0
        [1, 2, 6], [1, 6, 5]],       # x = 1
        dtype=np.int32)
    local_indices_1 = [1, 2, 5, 6]
    local_indices_2 = [0, 3]
    idx12_list = local_indices_1 + local_indices_2
    N1, N2, T = len(local_indices_1), len(local_indices_2), tris.shape[0]

    # deterministic vertex/face incidence matrices (the module's buffers).
    vfxy = np.zeros((N1 + N2, T), np.float32)
    for j, v in enumerate(idx12_list):
        vfxy[j] = np.any(tris == v, axis=1).astype(np.float32)
    vfx = vfxy[:N1].copy()

    temp_zero = jnp.asarray(verts)
    newtriangles_zero = jnp.asarray(tris)
    vertices_face_xy = jnp.asarray(vfxy)
    vertices_face_x = jnp.asarray(vfx)

    B = 2
    key = jax.random.PRNGKey(0)
    k1, k2 = jax.random.split(key)
    base_x = verts[np.array(local_indices_1)].reshape(1, -1)              # (1, N1*3)
    base_y = verts[np.array(local_indices_2)][:, [0, 2]].reshape(1, -1)   # (1, N2*2)
    x = jnp.asarray(base_x) + 0.1 * jax.random.normal(k1, (B, N1 * 3), jnp.float32)
    y = jnp.asarray(base_y) + 0.1 * jax.random.normal(k2, (B, N2 * 2), jnp.float32)

    forward = build_volume_normalizer(
        temp_zero, newtriangles_zero, vertices_face_x, vertices_face_xy,
        local_indices_1, local_indices_2)

    out1, out2 = forward(x, y)
    jax.block_until_ready((out1, out2))

    r1, r2 = _reference_forward(
        x, y, temp_zero, newtriangles_zero,
        vertices_face_x, vertices_face_xy,
        jnp.asarray(local_indices_1, jnp.int32),
        jnp.asarray(local_indices_2, jnp.int32))

    assert out1.shape == (B, N1, 3) and out2.shape == (B, N2, 2)
    err = max(float(jnp.max(jnp.abs(out1 - r1))),
              float(jnp.max(jnp.abs(out2 - r2))))
    assert err < 1e-3, f"max abs error vs reference: {err}"
    print("KERNEL_OK")
</pallas_src>

<mosaic_0001>
module attributes {stable_mosaic.version = 11 : i64} {
  func.func @_volume_norm_kernel(%arg0: i32, %arg1: memref<3x8x128xf32, #tpu.memory_space<vmem>>, %arg2: memref<128x384xf32, #tpu.memory_space<vmem>>, %arg3: memref<128x128xf32, #tpu.memory_space<vmem>>, %arg4: memref<128x128xf32, #tpu.memory_space<vmem>>, %arg5: memref<128x128xf32, #tpu.memory_space<vmem>>, %arg6: memref<128x384xf32, #tpu.memory_space<vmem>>, %arg7: memref<3x8x128xf32, #tpu.memory_space<vmem>>) attributes {dimension_semantics = [#tpu.dimension_semantics<parallel>], iteration_bounds = array<i64: 1>, scalar_prefetch = 0 : i64, scratch_operands = 0 : i64, tpu.core_type = #tpu.core_type<tc>, window_params = [{transform_indices = @transform_0, window_bounds = array<i64: 3, 8, 128>}, {pipeline_mode = #tpu.pipeline_mode<synchronous>, transform_indices = @transform_1, window_bounds = array<i64: 128, 384>}, {pipeline_mode = #tpu.pipeline_mode<synchronous>, transform_indices = @transform_2, window_bounds = array<i64: 128, 128>}, {pipeline_mode = #tpu.pipeline_mode<synchronous>, transform_indices = @transform_3, window_bounds = array<i64: 128, 128>}, {pipeline_mode = #tpu.pipeline_mode<synchronous>, transform_indices = @transform_4, window_bounds = array<i64: 128, 128>}, {pipeline_mode = #tpu.pipeline_mode<synchronous>, transform_indices = @transform_5, window_bounds = array<i64: 128, 384>}, {transform_indices = @transform_6, window_bounds = array<i64: 3, 8, 128>}]} {
    %c0 = arith.constant 0 : index
    %c0_0 = arith.constant 0 : index
    %0 = vector.load %arg2[%c0, %c0_0] : memref<128x384xf32, #tpu.memory_space<vmem>>, vector<128x384xf32>
    %c0_1 = arith.constant 0 : index
    %c0_2 = arith.constant 0 : index
    %1 = vector.load %arg3[%c0_1, %c0_2] : memref<128x128xf32, #tpu.memory_space<vmem>>, vector<128x128xf32>
    %c0_3 = arith.constant 0 : index
    %c0_4 = arith.constant 0 : index
    %2 = vector.load %arg4[%c0_3, %c0_4] : memref<128x128xf32, #tpu.memory_space<vmem>>, vector<128x128xf32>
    %c0_5 = arith.constant 0 : index
    %c0_6 = arith.constant 0 : index
    %3 = vector.load %arg5[%c0_5, %c0_6] : memref<128x128xf32, #tpu.memory_space<vmem>>, vector<128x128xf32>
    %c0_7 = arith.constant 0 : index
    %c0_8 = arith.constant 0 : index
    %4 = vector.load %arg6[%c0_7, %c0_8] : memref<128x384xf32, #tpu.memory_space<vmem>>, vector<128x384xf32>
    %c0_9 = arith.constant 0 : index
    %c0_10 = arith.constant 0 : index
    %c0_11 = arith.constant 0 : index
    %5 = vector.load %arg1[%c0_9, %c0_10, %c0_11] : memref<3x8x128xf32, #tpu.memory_space<vmem>>, vector<3x8x128xf32>
    %6 = vector.extract_strided_slice %5 {offsets = [0, 0, 0], sizes = [1, 8, 128], strides = [1, 1, 1]} : vector<3x8x128xf32> to vector<1x8x128xf32>
    %7 = vector.shape_cast %6 : vector<1x8x128xf32> to vector<8x128xf32>
    %8 = vector.extract_strided_slice %5 {offsets = [1, 0, 0], sizes = [1, 8, 128], strides = [1, 1, 1]} : vector<3x8x128xf32> to vector<1x8x128xf32>
    %9 = vector.shape_cast %8 : vector<1x8x128xf32> to vector<8x128xf32>
    %10 = vector.extract_strided_slice %5 {offsets = [2, 0, 0], sizes = [1, 8, 128], strides = [1, 1, 1]} : vector<3x8x128xf32> to vector<1x8x128xf32>
    %11 = vector.shape_cast %10 : vector<1x8x128xf32> to vector<8x128xf32>
    %12 = vector.shape_cast %5 : vector<3x8x128xf32> to vector<24x128xf32>
    %cst = arith.constant dense<0.000000e+00> : vector<24x384xf32>
    %13 = tpu.matmul %12, %0, %cst {dimension_numbers = #tpu.dot_dimension_numbers<[1], [0], [0], [1], [0, 0, 1, 1], [], []>} : vector<24x128xf32>, vector<128x384xf32>, vector<24x384xf32> -> vector<24x384xf32>
    %14 = vector.extract_strided_slice %13 {offsets = [0, 0], sizes = [8, 384], strides = [1, 1]} : vector<24x384xf32> to vector<8x384xf32>
    %15 = vector.extract_strided_slice %14 {offsets = [0, 0], sizes = [8, 128], strides = [1, 1]} : vector<8x384xf32> to vector<8x128xf32>
    %16 = vector.extract_strided_slice %14 {offsets = [0, 128], sizes = [8, 128], strides = [1, 1]} : vector<8x384xf32> to vector<8x128xf32>
    %17 = vector.extract_strided_slice %14 {offsets = [0, 256], sizes = [8, 128], strides = [1, 1]} : vector<8x384xf32> to vector<8x128xf32>
    %18 = vector.extract_strided_slice %13 {offsets = [8, 0], sizes = [8, 384], strides = [1, 1]} : vector<24x384xf32> to vector<8x384xf32>
    %19 = vector.extract_strided_slice %18 {offsets = [0, 0], sizes = [8, 128], strides = [1, 1]} : vector<8x384xf32> to vector<8x128xf32>
    %20 = vector.extract_strided_slice %18 {offsets = [0, 128], sizes = [8, 128], strides = [1, 1]} : vector<8x384xf32> to vector<8x128xf32>
    %21 = vector.extract_strided_slice %18 {offsets = [0, 256], sizes = [8, 128], strides = [1, 1]} : vector<8x384xf32> to vector<8x128xf32>
    %22 = vector.extract_strided_slice %13 {offsets = [16, 0], sizes = [8, 384], strides = [1, 1]} : vector<24x384xf32> to vector<8x384xf32>
    %23 = vector.extract_strided_slice %22 {offsets = [0, 0], sizes = [8, 128], strides = [1, 1]} : vector<8x384xf32> to vector<8x128xf32>
    %24 = vector.extract_strided_slice %22 {offsets = [0, 128], sizes = [8, 128], strides = [1, 1]} : vector<8x384xf32> to vector<8x128xf32>
    %25 = vector.extract_strided_slice %22 {offsets = [0, 256], sizes = [8, 128], strides = [1, 1]} : vector<8x384xf32> to vector<8x128xf32>
    %26 = arith.subf %15, %16 : vector<8x128xf32>
    %27 = arith.subf %25, %24 : vector<8x128xf32>
    %28 = arith.mulf %26, %27 : vector<8x128xf32>
    %29 = arith.subf %23, %24 : vector<8x128xf32>
    %30 = arith.subf %17, %16 : vector<8x128xf32>
    %31 = arith.mulf %29, %30 : vector<8x128xf32>
    %32 = arith.subf %28, %31 : vector<8x128xf32>
    %cst_12 = arith.constant 0.166666672 : f32
    %33 = vector.broadcast %cst_12 : f32 to vector<8x128xf32>
    %34 = arith.mulf %32, %33 : vector<8x128xf32>
    %35 = arith.addf %19, %20 : vector<8x128xf32>
    %36 = arith.addf %35, %21 : vector<8x128xf32>
    %37 = arith.mulf %36, %34 : vector<8x128xf32>
    %cst_13 = arith.constant dense<0.000000e+00> : vector<8xf32>
    %38 = vector.multi_reduction <add>, %37, %cst_13 [1] : vector<8x128xf32> to vector<8xf32>
    %39 = vector.shape_cast %38 : vector<8xf32> to vector<8x1xf32>
    %cst_14 = arith.constant 1.000000e+00 : f32
    %40 = vector.broadcast %cst_14 : f32 to vector<8x1xf32>
    %41 = arith.subf %40, %39 : vector<8x1xf32>
    %cst_15 = arith.constant 0.333333343 : f32
    %42 = vector.broadcast %cst_15 : f32 to vector<8x1xf32>
    %43 = arith.mulf %41, %42 : vector<8x1xf32>
    %44 = arith.subf %20, %19 : vector<8x128xf32>
    %45 = arith.subf %25, %23 : vector<8x128xf32>
    %46 = arith.mulf %44, %45 : vector<8x128xf32>
    %47 = arith.subf %24, %23 : vector<8x128xf32>
    %48 = arith.subf %21, %19 : vector<8x128xf32>
    %49 = arith.mulf %47, %48 : vector<8x128xf32>
    %50 = arith.subf %46, %49 : vector<8x128xf32>
    %cst_16 = arith.constant 0.166666672 : f32
    %51 = vector.broadcast %cst_16 : f32 to vector<8x128xf32>
    %52 = arith.mulf %50, %51 : vector<8x128xf32>
    %cst_17 = arith.constant dense<0.000000e+00> : vector<8x128xf32>
    %53 = tpu.matmul %52, %1, %cst_17 {dimension_numbers = #tpu.dot_dimension_numbers<[1], [0], [0], [1], [0, 0, 1, 1], [], []>} : vector<8x128xf32>, vector<128x128xf32>, vector<8x128xf32> -> vector<8x128xf32>
    %54 = arith.mulf %53, %53 : vector<8x128xf32>
    %cst_18 = arith.constant dense<0.000000e+00> : vector<8xf32>
    %55 = vector.multi_reduction <add>, %54, %cst_18 [1] : vector<8x128xf32> to vector<8xf32>
    %56 = vector.shape_cast %55 : vector<8xf32> to vector<8x1xf32>
    %57 = arith.divf %43, %56 : vector<8x1xf32>
    %58 = vector.broadcast %57 : vector<8x1xf32> to vector<8x128xf32>
    %59 = arith.mulf %53, %58 : vector<8x128xf32>
    %cst_19 = arith.constant dense<0.000000e+00> : vector<8x128xf32>
    %60 = tpu.matmul %59, %3, %cst_19 {dimension_numbers = #tpu.dot_dimension_numbers<[1], [0], [0], [1], [0, 0, 1, 1], [], []>} : vector<8x128xf32>, vector<128x128xf32>, vector<8x128xf32> -> vector<8x128xf32>
    %61 = arith.addf %7, %60 : vector<8x128xf32>
    %cst_20 = arith.constant dense<0.000000e+00> : vector<8x384xf32>
    %62 = tpu.matmul %59, %4, %cst_20 {dimension_numbers = #tpu.dot_dimension_numbers<[1], [0], [0], [1], [0, 0, 1, 1], [], []>} : vector<8x128xf32>, vector<128x384xf32>, vector<8x384xf32> -> vector<8x384xf32>
    %63 = vector.extract_strided_slice %62 {offsets = [0, 0], sizes = [8, 128], strides = [1, 1]} : vector<8x384xf32> to vector<8x128xf32>
    %64 = arith.addf %15, %63 : vector<8x128xf32>
    %65 = vector.extract_strided_slice %62 {offsets = [0, 128], sizes = [8, 128], strides = [1, 1]} : vector<8x384xf32> to vector<8x128xf32>
    %66 = arith.addf %16, %65 : vector<8x128xf32>
    %67 = vector.extract_strided_slice %62 {offsets = [0, 256], sizes = [8, 128], strides = [1, 1]} : vector<8x384xf32> to vector<8x128xf32>
    %68 = arith.addf %17, %67 : vector<8x128xf32>
    %69 = arith.subf %64, %66 : vector<8x128xf32>
    %70 = arith.subf %25, %24 : vector<8x128xf32>
    %71 = arith.mulf %69, %70 : vector<8x128xf32>
    %72 = arith.subf %23, %24 : vector<8x128xf32>
    %73 = arith.subf %68, %66 : vector<8x128xf32>
    %74 = arith.mulf %72, %73 : vector<8x128xf32>
    %75 = arith.subf %71, %74 : vector<8x128xf32>
    %cst_21 = arith.constant 0.166666672 : f32
    %76 = vector.broadcast %cst_21 : f32 to vector<8x128xf32>
    %77 = arith.mulf %75, %76 : vector<8x128xf32>
    %cst_22 = arith.constant dense<0.000000e+00> : vector<8x128xf32>
    %78 = tpu.matmul %77, %2, %cst_22 {dimension_numbers = #tpu.dot_dimension_numbers<[1], [0], [0], [1], [0, 0, 1, 1], [], []>} : vector<8x128xf32>, vector<128x128xf32>, vector<8x128xf32> -> vector<8x128xf32>
    %79 = arith.mulf %78, %78 : vector<8x128xf32>
    %cst_23 = arith.constant dense<0.000000e+00> : vector<8xf32>
    %80 = vector.multi_reduction <add>, %79, %cst_23 [1] : vector<8x128xf32> to vector<8xf32>
    %81 = vector.shape_cast %80 : vector<8xf32> to vector<8x1xf32>
    %82 = arith.divf %43, %81 : vector<8x1xf32>
    %83 = vector.broadcast %82 : vector<8x1xf32> to vector<8x128xf32>
    %84 = arith.mulf %78, %83 : vector<8x128xf32>
    %cst_24 = arith.constant dense<0.000000e+00> : vector<8x128xf32>
    %85 = tpu.matmul %84, %3, %cst_24 {dimension_numbers = #tpu.dot_dimension_numbers<[1], [0], [0], [1], [0, 0, 1, 1], [], []>} : vector<8x128xf32>, vector<128x128xf32>, vector<8x128xf32> -> vector<8x128xf32>
    %86 = arith.addf %9, %85 : vector<8x128xf32>
    %cst_25 = arith.constant dense<0.000000e+00> : vector<8x384xf32>
    %87 = tpu.matmul %84, %4, %cst_25 {dimension_numbers = #tpu.dot_dimension_numbers<[1], [0], [0], [1], [0, 0, 1, 1], [], []>} : vector<8x128xf32>, vector<128x384xf32>, vector<8x384xf32> -> vector<8x384xf32>
    %88 = vector.extract_strided_slice %87 {offsets = [0, 0], sizes = [8, 128], strides = [1, 1]} : vector<8x384xf32> to vector<8x128xf32>
    %89 = arith.addf %19, %88 : vector<8x128xf32>
    %90 = vector.extract_strided_slice %87 {offsets = [0, 128], sizes = [8, 128], strides = [1, 1]} : vector<8x384xf32> to vector<8x128xf32>
    %91 = arith.addf %20, %90 : vector<8x128xf32>
    %92 = vector.extract_strided_slice %87 {offsets = [0, 256], sizes = [8, 128], strides = [1, 1]} : vector<8x384xf32> to vector<8x128xf32>
    %93 = arith.addf %21, %92 : vector<8x128xf32>
    %94 = arith.subf %64, %68 : vector<8x128xf32>
    %95 = arith.subf %91, %93 : vector<8x128xf32>
    %96 = arith.mulf %94, %95 : vector<8x128xf32>
    %97 = arith.subf %89, %93 : vector<8x128xf32>
    %98 = arith.subf %66, %68 : vector<8x128xf32>
    %99 = arith.mulf %97, %98 : vector<8x128xf32>
    %100 = arith.subf %96, %99 : vector<8x128xf32>
    %cst_26 = arith.constant 0.166666672 : f32
    %101 = vector.broadcast %cst_26 : f32 to vector<8x128xf32>
    %102 = arith.mulf %100, %101 : vector<8x128xf32>
    %cst_27 = arith.constant dense<0.000000e+00> : vector<8x128xf32>
    %103 = tpu.matmul %102, %1, %cst_27 {dimension_numbers = #tpu.dot_dimension_numbers<[1], [0], [0], [1], [0, 0, 1, 1], [], []>} : vector<8x128xf32>, vector<128x128xf32>, vector<8x128xf32> -> vector<8x128xf32>
    %104 = arith.mulf %103, %103 : vector<8x128xf32>
    %cst_28 = arith.constant dense<0.000000e+00> : vector<8xf32>
    %105 = vector.multi_reduction <add>, %104, %cst_28 [1] : vector<8x128xf32> to vector<8xf32>
    %106 = vector.shape_cast %105 : vector<8xf32> to vector<8x1xf32>
    %107 = arith.divf %43, %106 : vector<8x1xf32>
    %108 = vector.broadcast %107 : vector<8x1xf32> to vector<8x128xf32>
    %109 = arith.mulf %103, %108 : vector<8x128xf32>
    %cst_29 = arith.constant dense<0.000000e+00> : vector<8x128xf32>
    %110 = tpu.matmul %109, %3, %cst_29 {dimension_numbers = #tpu.dot_dimension_numbers<[1], [0], [0], [1], [0, 0, 1, 1], [], []>} : vector<8x128xf32>, vector<128x128xf32>, vector<8x128xf32> -> vector<8x128xf32>
    %111 = arith.addf %11, %110 : vector<8x128xf32>
    %c0_30 = arith.constant 0 : index
    %c0_31 = arith.constant 0 : index
    %c0_32 = arith.constant 0 : index
    %112 = vector.load %arg7[%c0_30, %c0_31, %c0_32] : memref<3x8x128xf32, #tpu.memory_space<vmem>>, vector<1x8x128xf32>
    %113 = vector.shape_cast %112 : vector<1x8x128xf32> to vector<8x128xf32>
    %114 = vector.shape_cast %61 : vector<8x128xf32> to vector<1x8x128xf32>
    tpu.vector_store %arg7[%c0_30, %c0_31, %c0_32], %114 {strides = array<i32>} : memref<3x8x128xf32, #tpu.memory_space<vmem>>, vector<1x8x128xf32>,
    %c1 = arith.constant 1 : index
    %c0_33 = arith.constant 0 : index
    %c0_34 = arith.constant 0 : index
    %115 = vector.load %arg7[%c1, %c0_33, %c0_34] : memref<3x8x128xf32, #tpu.memory_space<vmem>>, vector<1x8x128xf32>
    %116 = vector.shape_cast %115 : vector<1x8x128xf32> to vector<8x128xf32>
    %117 = vector.shape_cast %86 : vector<8x128xf32> to vector<1x8x128xf32>
    tpu.vector_store %arg7[%c1, %c0_33, %c0_34], %117 {strides = array<i32>} : memref<3x8x128xf32, #tpu.memory_space<vmem>>, vector<1x8x128xf32>,
    %c2 = arith.constant 2 : index
    %c0_35 = arith.constant 0 : index
    %c0_36 = arith.constant 0 : index
    %118 = vector.load %arg7[%c2, %c0_35, %c0_36] : memref<3x8x128xf32, #tpu.memory_space<vmem>>, vector<1x8x128xf32>
    %119 = vector.shape_cast %118 : vector<1x8x128xf32> to vector<8x128xf32>
    %120 = vector.shape_cast %111 : vector<8x128xf32> to vector<1x8x128xf32>
    tpu.vector_store %arg7[%c2, %c0_35, %c0_36], %120 {strides = array<i32>} : memref<3x8x128xf32, #tpu.memory_space<vmem>>, vector<1x8x128xf32>,
    return
  }
  func.func @transform_0(%arg0: i32) -> (i32, i32, i32) {
    %c0_i32 = arith.constant 0 : i32
    %c0_i32_0 = arith.constant 0 : i32
    %c0_i32_1 = arith.constant 0 : i32
    return %c0_i32, %arg0, %c0_i32_0 : i32, i32, i32
  }
  func.func @transform_1(%arg0: i32) -> (i32, i32) {
    %c0_i32 = arith.constant 0 : i32
    %c0_i32_0 = arith.constant 0 : i32
    %c0_i32_1 = arith.constant 0 : i32
    return %c0_i32, %c0_i32_0 : i32, i32
  }
  func.func @transform_2(%arg0: i32) -> (i32, i32) {
    %c0_i32 = arith.constant 0 : i32
    %c0_i32_0 = arith.constant 0 : i32
    %c0_i32_1 = arith.constant 0 : i32
    return %c0_i32, %c0_i32_0 : i32, i32
  }
  func.func @transform_3(%arg0: i32) -> (i32, i32) {
    %c0_i32 = arith.constant 0 : i32
    %c0_i32_0 = arith.constant 0 : i32
    %c0_i32_1 = arith.constant 0 : i32
    return %c0_i32, %c0_i32_0 : i32, i32
  }
  func.func @transform_4(%arg0: i32) -> (i32, i32) {
    %c0_i32 = arith.constant 0 : i32
    %c0_i32_0 = arith.constant 0 : i32
    %c0_i32_1 = arith.constant 0 : i32
    return %c0_i32, %c0_i32_0 : i32, i32
  }
  func.func @transform_5(%arg0: i32) -> (i32, i32) {
    %c0_i32 = arith.constant 0 : i32
    %c0_i32_0 = arith.constant 0 : i32
    %c0_i32_1 = arith.constant 0 : i32
    return %c0_i32, %c0_i32_0 : i32, i32
  }
  func.func @transform_6(%arg0: i32) -> (i32, i32, i32) {
    %c0_i32 = arith.constant 0 : i32
    %c0_i32_0 = arith.constant 0 : i32
    %c0_i32_1 = arith.constant 0 : i32
    return %c0_i32, %arg0, %c0_i32_0 : i32, i32, i32
  }
}

</mosaic_0001>

<llo_original>
// kernel: forward.1
$region0: #{forward.1}
  #allocation0 [shape = 'u32[]', space=smem, size = 0x4, offset = 0x4, fixed_abs, tag = 'smem constant byte address 0x4 - core index']
  #allocation1 [shape = 'u32[144,128]{1,0:T(1,128)}', space=vmem, size = 0x12000, scoped, tag = 'internal scratch']
  %s0 = inlined_call_operand.vmem [shape: f32[3,8,128], index: 0, kind: input, shape index: {}]
  %s1 = inlined_call_operand.vmem [shape: f32[128,384], index: 1, kind: input, shape index: {}]
  %s2 = inlined_call_operand.vmem [shape: f32[128,128], index: 2, kind: input, shape index: {}]
  %s3 = inlined_call_operand.vmem [shape: f32[128,128], index: 3, kind: input, shape index: {}]
  %s4 = inlined_call_operand.vmem [shape: f32[128,128], index: 4, kind: input, shape index: {}]
  %s5 = inlined_call_operand.vmem [shape: f32[128,384], index: 5, kind: input, shape index: {}]
  %s6 = inlined_call_operand.vmem [shape: f32[3,8,128], index: 6, kind: output, shape index: {}]
  %s7 = sld [smem:[#allocation0]]
  $region34: #{forward.1} parent=0
    _
  %s9 = ssub.s32 1, %s7
  %s10 = scalar_select 0, %s9, %s7
  // Predicated region
  $region2: #{forward.1} parent=0 // pred_check
    _
  $region3: #{forward.1} parent=0 // pred_check_branch
    %12 = sbr.rel (0) target = $region5
  $region4: #{forward.1} parent=0 // pred_region
    _
  $region5: #{forward.1} parent=0 // pred_fallthru
    _
  // Predicated region
  $region6: #{forward.1} parent=0 // pred_check
    _
  $region7: #{forward.1} parent=0 // pred_check_branch
    %14 = sbr.rel (0) target = $region9
  $region8: #{forward.1} parent=0 // pred_region
    _
  $region9: #{forward.1} parent=0 // pred_fallthru
    _
  // Predicated region
  $region10: #{forward.1} parent=0 // pred_check
    _
  $region11: #{forward.1} parent=0 // pred_check_branch
    %16 = sbr.rel (0) target = $region13
  $region12: #{forward.1} parent=0 // pred_region
    _
  $region13: #{forward.1} parent=0 // pred_fallthru
    _
  // Predicated region
  $region14: #{forward.1} parent=0 // pred_check
    _
  $region15: #{forward.1} parent=0 // pred_check_branch
    %18 = sbr.rel (0) target = $region17
  $region16: #{forward.1} parent=0 // pred_region
    _
  $region17: #{forward.1} parent=0 // pred_fallthru
    _
  // Predicated region
  $region18: #{forward.1} parent=0 // pred_check
    _
  $region19: #{forward.1} parent=0 // pred_check_branch
    %20 = sbr.rel (0) target = $region21
  $region20: #{forward.1} parent=0 // pred_region
    _
  $region21: #{forward.1} parent=0 // pred_fallthru
    _
  // Predicated region
  $region22: #{forward.1} parent=0 // pred_check
    _
  $region23: #{forward.1} parent=0 // pred_check_branch
    %22 = sbr.rel (0) target = $region25
  $region24: #{forward.1} parent=0 // pred_region
    _
  $region25: #{forward.1} parent=0 // pred_fallthru
    _
  %v23 = vld [vmem:[%s1] sm:$0xff]
  %v24 = vld [vmem:[%s1 + $0x8] sm:$0xff]
  %v25 = vld [vmem:[%s1 + $0x10] sm:$0xff]
  %v26 = vld [vmem:[%s1 + $0x18] sm:$0xff]
  %v27 = vld [vmem:[%s1 + $0x20] sm:$0xff]
  %v28 = vld [vmem:[%s1 + $0x28] sm:$0xff]
  %v29 = vld [vmem:[%s1 + $0x30] sm:$0xff]
  %v30 = vld [vmem:[%s1 + $0x38] sm:$0xff]
  %v31 = vld [vmem:[%s1 + $0x40] sm:$0xff]
  %v32 = vld [vmem:[%s1 + $0x48] sm:$0xff]
  %v33 = vld [vmem:[%s1 + $0x50] sm:$0xff]
  %v34 = vld [vmem:[%s1 + $0x58] sm:$0xff]
  %v35 = vld [vmem:[%s1 + $0x60] sm:$0xff]
  %v36 = vld [vmem:[%s1 + $0x68] sm:$0xff]
  %v37 = vld [vmem:[%s1 + $0x70] sm:$0xff]
  %v38 = vld [vmem:[%s1 + $0x78] sm:$0xff]
  %v39 = vld [vmem:[%s1 + $0x80] sm:$0xff]
  %v40 = vld [vmem:[%s1 + $0x88] sm:$0xff]
  %v41 = vld [vmem:[%s1 + $0x90] sm:$0xff]
  %v42 = vld [vmem:[%s1 + $0x98] sm:$0xff]
  %v43 = vld [vmem:[%s1 + $0xa0] sm:$0xff]
  %v44 = vld [vmem:[%s1 + $0xa8] sm:$0xff]
  %v45 = vld [vmem:[%s1 + $0xb0] sm:$0xff]
  %v46 = vld [vmem:[%s1 + $0xb8] sm:$0xff]
  %v47 = vld [vmem:[%s1 + $0xc0] sm:$0xff]
  %v48 = vld [vmem:[%s1 + $0xc8] sm:$0xff]
  %v49 = vld [vmem:[%s1 + $0xd0] sm:$0xff]
  %v50 = vld [vmem:[%s1 + $0xd8] sm:$0xff]
  %v51 = vld [vmem:[%s1 + $0xe0] sm:$0xff]
  %v52 = vld [vmem:[%s1 + $0xe8] sm:$0xff]
  %v53 = vld [vmem:[%s1 + $0xf0] sm:$0xff]
  %v54 = vld [vmem:[%s1 + $0xf8] sm:$0xff]
  %v55 = vld [vmem:[%s1 + $0x100] sm:$0xff]
  %v56 = vld [vmem:[%s1 + $0x108] sm:$0xff]
  %v57 = vld [vmem:[%s1 + $0x110] sm:$0xff]
  %v58 = vld [vmem:[%s1 + $0x118] sm:$0xff]
  %v59 = vld [vmem:[%s1 + $0x120] sm:$0xff]
  %v60 = vld [vmem:[%s1 + $0x128] sm:$0xff]
  %v61 = vld [vmem:[%s1 + $0x130] sm:$0xff]
  %v62 = vld [vmem:[%s1 + $0x138] sm:$0xff]
  %v63 = vld [vmem:[%s1 + $0x140] sm:$0xff]
  %v64 = vld [vmem:[%s1 + $0x148] sm:$0xff]
  %v65 = vld [vmem:[%s1 + $0x150] sm:$0xff]
  %v66 = vld [vmem:[%s1 + $0x158] sm:$0xff]
  %v67 = vld [vmem:[%s1 + $0x160] sm:$0xff]
  %v68 = vld [vmem:[%s1 + $0x168] sm:$0xff]
  %v69 = vld [vmem:[%s1 + $0x170] sm:$0xff]
  %v70 = vld [vmem:[%s1 + $0x178] sm:$0xff]
  %v71 = vld [vmem:[%s2] sm:$0xff]
  %v72 = vld [vmem:[%s2 + $0x8] sm:$0xff]
  %v73 = vld [vmem:[%s2 + $0x10] sm:$0xff]
  %v74 = vld [vmem:[%s2 + $0x18] sm:$0xff]
  %v75 = vld [vmem:[%s2 + $0x20] sm:$0xff]
  %v76 = vld [vmem:[%s2 + $0x28] sm:$0xff]
  %v77 = vld [vmem:[%s2 + $0x30] sm:$0xff]
  %v78 = vld [vmem:[%s2 + $0x38] sm:$0xff]
  %v79 = vld [vmem:[%s2 + $0x40] sm:$0xff]
  %v80 = vld [vmem:[%s2 + $0x48] sm:$0xff]
  %v81 = vld [vmem:[%s2 + $0x50] sm:$0xff]
  %v82 = vld [vmem:[%s2 + $0x58] sm:$0xff]
  %v83 = vld [vmem:[%s2 + $0x60] sm:$0xff]
  %v84 = vld [vmem:[%s2 + $0x68] sm:$0xff]
  %v85 = vld [vmem:[%s2 + $0x70] sm:$0xff]
  %v86 = vld [vmem:[%s2 + $0x78] sm:$0xff]
  %v87 = vld [vmem:[%s3] sm:$0xff]
  %v88 = vld [vmem:[%s3 + $0x8] sm:$0xff]
  %v89 = vld [vmem:[%s3 + $0x10] sm:$0xff]
  %v90 = vld [vmem:[%s3 + $0x18] sm:$0xff]
  %v91 = vld [vmem:[%s3 + $0x20] sm:$0xff]
  %v92 = vld [vmem:[%s3 + $0x28] sm:$0xff]
  %v93 = vld [vmem:[%s3 + $0x30] sm:$0xff]
  %v94 = vld [vmem:[%s3 + $0x38] sm:$0xff]
  %v95 = vld [vmem:[%s3 + $0x40] sm:$0xff]
  %v96 = vld [vmem:[%s3 + $0x48] sm:$0xff]
  %v97 = vld [vmem:[%s3 + $0x50] sm:$0xff]
  %v98 = vld [vmem:[%s3 + $0x58] sm:$0xff]
  %v99 = vld [vmem:[%s3 + $0x60] sm:$0xff]
  %v100 = vld [vmem:[%s3 + $0x68] sm:$0xff]
  %v101 = vld [vmem:[%s3 + $0x70] sm:$0xff]
  %v102 = vld [vmem:[%s3 + $0x78] sm:$0xff]
  %v103 = vld [vmem:[%s4] sm:$0xff]
  %v104 = vld [vmem:[%s4 + $0x8] sm:$0xff]
  %v105 = vld [vmem:[%s4 + $0x10] sm:$0xff]
  %v106 = vld [vmem:[%s4 + $0x18] sm:$0xff]
  %v107 = vld [vmem:[%s4 + $0x20] sm:$0xff]
  %v108 = vld [vmem:[%s4 + $0x28] sm:$0xff]
  %v109 = vld [vmem:[%s4 + $0x30] sm:$0xff]
  %v110 = vld [vmem:[%s4 + $0x38] sm:$0xff]
  %v111 = vld [vmem:[%s4 + $0x40] sm:$0xff]
  %v112 = vld [vmem:[%s4 + $0x48] sm:$0xff]
  %v113 = vld [vmem:[%s4 + $0x50] sm:$0xff]
  %v114 = vld [vmem:[%s4 + $0x58] sm:$0xff]
  %v115 = vld [vmem:[%s4 + $0x60] sm:$0xff]
  %v116 = vld [vmem:[%s4 + $0x68] sm:$0xff]
  %v117 = vld [vmem:[%s4 + $0x70] sm:$0xff]
  %v118 = vld [vmem:[%s4 + $0x78] sm:$0xff]
  %v119 = vld [vmem:[%s5] sm:$0xff]
  %v120 = vld [vmem:[%s5 + $0x8] sm:$0xff]
  %v121 = vld [vmem:[%s5 + $0x10] sm:$0xff]
  %v122 = vld [vmem:[%s5 + $0x18] sm:$0xff]
  %v123 = vld [vmem:[%s5 + $0x20] sm:$0xff]
  %v124 = vld [vmem:[%s5 + $0x28] sm:$0xff]
  %v125 = vld [vmem:[%s5 + $0x30] sm:$0xff]
  %v126 = vld [vmem:[%s5 + $0x38] sm:$0xff]
  %v127 = vld [vmem:[%s5 + $0x40] sm:$0xff]
  %v128 = vld [vmem:[%s5 + $0x48] sm:$0xff]
  %v129 = vld [vmem:[%s5 + $0x50] sm:$0xff]
  %v130 = vld [vmem:[%s5 + $0x58] sm:$0xff]
  %v131 = vld [vmem:[%s5 + $0x60] sm:$0xff]
  %v132 = vld [vmem:[%s5 + $0x68] sm:$0xff]
  %v133 = vld [vmem:[%s5 + $0x70] sm:$0xff]
  %v134 = vld [vmem:[%s5 + $0x78] sm:$0xff]
  %v135 = vld [vmem:[%s5 + $0x80] sm:$0xff]
  %v136 = vld [vmem:[%s5 + $0x88] sm:$0xff]
  %v137 = vld [vmem:[%s5 + $0x90] sm:$0xff]
  %v138 = vld [vmem:[%s5 + $0x98] sm:$0xff]
  %v139 = vld [vmem:[%s5 + $0xa0] sm:$0xff]
  %v140 = vld [vmem:[%s5 + $0xa8] sm:$0xff]
  %v141 = vld [vmem:[%s5 + $0xb0] sm:$0xff]
  %v142 = vld [vmem:[%s5 + $0xb8] sm:$0xff]
  %v143 = vld [vmem:[%s5 + $0xc0] sm:$0xff]
  %v144 = vld [vmem:[%s5 + $0xc8] sm:$0xff]
  %v145 = vld [vmem:[%s5 + $0xd0] sm:$0xff]
  %v146 = vld [vmem:[%s5 + $0xd8] sm:$0xff]
  %v147 = vld [vmem:[%s5 + $0xe0] sm:$0xff]
  %v148 = vld [vmem:[%s5 + $0xe8] sm:$0xff]
  %v149 = vld [vmem:[%s5 + $0xf0] sm:$0xff]
  %v150 = vld [vmem:[%s5 + $0xf8] sm:$0xff]
  %v151 = vld [vmem:[%s5 + $0x100] sm:$0xff]
  %v152 = vld [vmem:[%s5 + $0x108] sm:$0xff]
  %v153 = vld [vmem:[%s5 + $0x110] sm:$0xff]
  %v154 = vld [vmem:[%s5 + $0x118] sm:$0xff]
  %v155 = vld [vmem:[%s5 + $0x120] sm:$0xff]
  %v156 = vld [vmem:[%s5 + $0x128] sm:$0xff]
  %v157 = vld [vmem:[%s5 + $0x130] sm:$0xff]
  %v158 = vld [vmem:[%s5 + $0x138] sm:$0xff]
  %v159 = vld [vmem:[%s5 + $0x140] sm:$0xff]
  %v160 = vld [vmem:[%s5 + $0x148] sm:$0xff]
  %v161 = vld [vmem:[%s5 + $0x150] sm:$0xff]
  %v162 = vld [vmem:[%s5 + $0x158] sm:$0xff]
  %v163 = vld [vmem:[%s5 + $0x160] sm:$0xff]
  %v164 = vld [vmem:[%s5 + $0x168] sm:$0xff]
  %v165 = vld [vmem:[%s5 + $0x170] sm:$0xff]
  %v166 = vld [vmem:[%s5 + $0x178] sm:$0xff]
  %v167 = vld [vmem:[%s0] sm:$0xff]
  %v168 = vld [vmem:[%s0 + $0x8] sm:$0xff]
  %v169 = vld [vmem:[%s0 + $0x10] sm:$0xff]
  %170 = vmatprep.subr.mxu0 %v69
  %171 = vmatpush1.msra.mxu0 %v68
  %172 = vmatprep.subr.mxu0 %v66
  %173 = vmatpush1.msra.mxu0 %v65
  %174 = vmatprep.subr.mxu0 %v63
  %175 = vmatpush1.msra.mxu0 %v62
  %176 = vmatprep.subr.mxu0 %v60
  %177 = vmatpush1.msra.mxu0 %v59
  %178 = vmatprep.subr.mxu0 %v57
  %179 = vmatpush1.msra.mxu0 %v56
  %180 = vmatprep.subr.mxu0 %v54
  %181 = vmatpush1.msra.mxu0 %v53
  %182 = vmatprep.subr.mxu0 %v51
  %183 = vmatpush1.msra.mxu0 %v50
  %184 = vmatprep.subr.mxu0 %v48
  %185 = vmatpush1.msra.mxu0 %v47
  %186 = vmatprep.subr.mxu0 %v45
  %187 = vmatpush1.msra.mxu0 %v44
  %188 = vmatprep.subr.mxu0 %v42
  %189 = vmatpush1.msra.mxu0 %v41
  %190 = vmatprep.subr.mxu0 %v39
  %191 = vmatpush1.msra.mxu0 %v38
  %192 = vmatprep.subr.mxu0 %v36
  %193 = vmatpush1.msra.mxu0 %v35
  %194 = vmatprep.subr.mxu0 %v33
  %195 = vmatpush1.msra.mxu0 %v32
  %196 = vmatprep.subr.mxu0 %v30
  %197 = vmatpush1.msra.mxu0 %v29
  %198 = vmatprep.subr.mxu0 %v27
  %199 = vmatpush1.msra.mxu0 %v26
  %200 = vmatprep.subr.mxu0 %v24
  %201 = vmatpush1.msra.mxu0 %v23
  %202 = vmatprep.subr.mxu0 0.0
  %203 = vmatpush2.msra.mxu0 0.0
  %204 = vmatprep.subr.mxu0 0.0
  %205 = vmatpush2.msra.mxu0 0.0
  %206 = vmatprep.subr.mxu0 0.0
  %207 = vmatpush2.msra.mxu0 0.0
  %208 = vmatprep.subr.mxu0 0.0
  %209 = vmatpush2.msra.mxu0 0.0
  %210 = vmatprep.subr.mxu0 0.0
  %211 = vmatpush2.msra.mxu0 0.0
  %212 = vmatprep.subr.mxu0 0.0
  %213 = vmatpush2.msra.mxu0 0.0
  %214 = vmatprep.subr.mxu0 0.0
  %215 = vmatpush2.msra.mxu0 0.0
  %216 = vmatprep.subr.mxu0 0.0
  %217 = vmatpush2.msra.mxu0 0.0
  %218 = vmatprep.subr.mxu0 0.0
  %219 = vmatpush2.msra.mxu0 0.0
  %220 = vmatprep.subr.mxu0 0.0
  %221 = vmatpush2.msra.mxu0 0.0
  %222 = vmatprep.subr.mxu0 0.0
  %223 = vmatpush2.msra.mxu0 0.0
  %224 = vmatprep.subr.mxu0 0.0
  %225 = vmatpush2.msra.mxu0 0.0
  %226 = vmatprep.subr.mxu0 0.0
  %227 = vmatpush2.msra.mxu0 0.0
  %228 = vmatprep.subr.mxu0 0.0
  %229 = vmatpush2.msra.mxu0 0.0
  %230 = vmatprep.subr.mxu0 0.0
  %231 = vmatpush2.msra.mxu0 0.0
  %232 = vmatprep.subr.mxu0 0.0
  %233 = vmatpush2.msra.mxu0 0.0
  %234 = vmatprep.mubr.f32.mxu0 0.0
  %235 = vmatmul.mubr.f32.gmra.mxu0 %v167
  %v236 = vpop.f32.mrf.mxu0
  %v237 = vadd.f32 0.0, %v236
  %v238 = vpop.f32.mrf.mxu0
  %v239 = vadd.f32 0.0, %v238
  %240 = vmatprep.mubr.f32.mxu0 0.0
  %241 = vmatmul.mubr.f32.gmra.mxu0 %v168
  %v242 = vpop.f32.mrf.mxu0
  %v243 = vadd.f32 0.0, %v242
  %v244 = vpop.f32.mrf.mxu0
  %v245 = vadd.f32 0.0, %v244
  %246 = vmatprep.mubr.f32.mxu0 0.0
  %247 = vmatmul.mubr.f32.gmra.mxu0 %v169
  %v248 = vpop.f32.mrf.mxu0
  %v249 = vadd.f32 0.0, %v248
  %v250 = vpop.f32.mrf.mxu0
  %v251 = vadd.f32 0.0, %v250
  %252 = vdwg.mxu0
  %253 = vmatprep.subr.mxu0 0.0
  %254 = vmatpush1.msra.mxu0 %v70
  %255 = vmatprep.subr.mxu0 0.0
  %256 = vmatpush1.msra.mxu0 %v67
  %257 = vmatprep.subr.mxu0 0.0
  %258 = vmatpush1.msra.mxu0 %v64
  %259 = vmatprep.subr.mxu0 0.0
  %260 = vmatpush1.msra.mxu0 %v61
  %261 = vmatprep.subr.mxu0 0.0
  %262 = vmatpush1.msra.mxu0 %v58
  %263 = vmatprep.subr.mxu0 0.0
  %264 = vmatpush1.msra.mxu0 %v55
  %265 = vmatprep.subr.mxu0 0.0
  %266 = vmatpush1.msra.mxu0 %v52
  %267 = vmatprep.subr.mxu0 0.0
  %268 = vmatpush1.msra.mxu0 %v49
  %269 = vmatprep.subr.mxu0 0.0
  %270 = vmatpush1.msra.mxu0 %v46
  %271 = vmatprep.subr.mxu0 0.0
  %272 = vmatpush1.msra.mxu0 %v43
  %273 = vmatprep.subr.mxu0 0.0
  %274 = vmatpush1.msra.mxu0 %v40
  %275 = vmatprep.subr.mxu0 0.0
  %276 = vmatpush1.msra.mxu0 %v37
  %277 = vmatprep.subr.mxu0 0.0
  %278 = vmatpush1.msra.mxu0 %v34
  %279 = vmatprep.subr.mxu0 0.0
  %280 = vmatpush1.msra.mxu0 %v31
  %281 = vmatprep.subr.mxu0 0.0
  %282 = vmatpush1.msra.mxu0 %v28
  %283 = vmatprep.subr.mxu0 0.0
  %284 = vmatpush1.msra.mxu0 %v25
  %285 = vmatprep.subr.mxu0 0.0
  %286 = vmatpush2.msra.mxu0 0.0
  %287 = vmatprep.subr.mxu0 0.0
  %288 = vmatpush2.msra.mxu0 0.0
  %289 = vmatprep.subr.mxu0 0.0
  %290 = vmatpush2.msra.mxu0 0.0
  %291 = vmatprep.subr.mxu0 0.0
  %292 = vmatpush2.msra.mxu0 0.0
  %293 = vmatprep.subr.mxu0 0.0
  %294 = vmatpush2.msra.mxu0 0.0
  %295 = vmatprep.subr.mxu0 0.0
  %296 = vmatpush2.msra.mxu0 0.0
  %297 = vmatprep.subr.mxu0 0.0
  %298 = vmatpush2.msra.mxu0 0.0
  %299 = vmatprep.subr.mxu0 0.0
  %300 = vmatpush2.msra.mxu0 0.0
  %301 = vmatprep.subr.mxu0 0.0
  %302 = vmatpush2.msra.mxu0 0.0
  %303 = vmatprep.subr.mxu0 0.0
  %304 = vmatpush2.msra.mxu0 0.0
  %305 = vmatprep.subr.mxu0 0.0
  %306 = vmatpush2.msra.mxu0 0.0
  %307 = vmatprep.subr.mxu0 0.0
  %308 = vmatpush2.msra.mxu0 0.0
  %309 = vmatprep.subr.mxu0 0.0
  %310 = vmatpush2.msra.mxu0 0.0
  %311 = vmatprep.subr.mxu0 0.0
  %312 = vmatpush2.msra.mxu0 0.0
  %313 = vmatprep.subr.mxu0 0.0
  %314 = vmatpush2.msra.mxu0 0.0
  %315 = vmatprep.subr.mxu0 0.0
  %316 = vmatpush2.msra.mxu0 0.0
  %317 = vmatprep.mubr.f32.mxu0 0.0
  %318 = vmatmul.mubr.f32.gmra.mxu0 %v167
  %v319 = vpop.f32.mrf.mxu0
  %v320 = vadd.f32 0.0, %v319
  %v321 = vpop.f32.mrf.mxu0
  %322 = vmatprep.mubr.f32.mxu0 0.0
  %323 = vmatmul.mubr.f32.gmra.mxu0 %v168
  %v324 = vpop.f32.mrf.mxu0
  %v325 = vadd.f32 0.0, %v324
  %v326 = vpop.f32.mrf.mxu0
  %327 = vmatprep.mubr.f32.mxu0 0.0
  %328 = vmatmul.mubr.f32.gmra.mxu0 %v169
  %v329 = vpop.f32.mrf.mxu0
  %v330 = vadd.f32 0.0, %v329
  %v331 = vpop.f32.mrf.mxu0
  %332 = vdwg.mxu0
  %v333 = vsub.f32 %v237, %v239
  %v334 = vsub.f32 %v330, %v251
  %v335 = vmul.f32 %v333, %v334
  %v336 = vsub.f32 %v249, %v251
  %v337 = vsub.f32 %v320, %v239
  %v338 = vmul.f32 %v336, %v337
  %v339 = vsub.f32 %v335, %v338
  %v340 = vmul.f32 %v339, 0.16666667
  %v341 = vadd.f32 %v243, %v245
  %v342 = vadd.f32 %v341, %v325
  %v343 = vmul.f32 %v342, %v340
  %344 = vadd.xlane.f32.xlu0 %v343
  %v345 = vpop.xlane.xlu0 %344
  %v346 = vsub.f32 1.0, %v345
  %v347 = vmul.f32 %v346, 0.33333334
  %v348 = vsub.f32 %v245, %v243
  %v349 = vsub.f32 %v330, %v249
  %v350 = vmul.f32 %v348, %v349
  %v351 = vsub.f32 %v251, %v249
  %v352 = vsub.f32 %v325, %v243
  %v353 = vmul.f32 %v351, %v352
  %v354 = vsub.f32 %v350, %v353
  %v355 = vmul.f32 %v354, 0.16666667
  %356 = vmatprep.subr.mxu0 0.0
  %357 = vmatpush1.msra.mxu0 %v86
  %358 = vmatprep.subr.mxu0 0.0
  %359 = vmatpush1.msra.mxu0 %v85
  %360 = vmatprep.subr.mxu0 0.0
  %361 = vmatpush1.msra.mxu0 %v84
  %362 = vmatprep.subr.mxu0 0.0
  %363 = vmatpush1.msra.mxu0 %v83
  %364 = vmatprep.subr.mxu0 0.0
  %365 = vmatpush1.msra.mxu0 %v82
  %366 = vmatprep.subr.mxu0 0.0
  %367 = vmatpush1.msra.mxu0 %v81
  %368 = vmatprep.subr.mxu0 0.0
  %369 = vmatpush1.msra.mxu0 %v80
  %370 = vmatprep.subr.mxu0 0.0
  %371 = vmatpush1.msra.mxu0 %v79
  %372 = vmatprep.subr.mxu0 0.0
  %373 = vmatpush1.msra.mxu0 %v78
  %374 = vmatprep.subr.mxu0 0.0
  %375 = vmatpush1.msra.mxu0 %v77
  %376 = vmatprep.subr.mxu0 0.0
  %377 = vmatpush1.msra.mxu0 %v76
  %378 = vmatprep.subr.mxu0 0.0
  %379 = vmatpush1.msra.mxu0 %v75
  %380 = vmatprep.subr.mxu0 0.0
  %381 = vmatpush1.msra.mxu0 %v74
  %382 = vmatprep.subr.mxu0 0.0
  %383 = vmatpush1.msra.mxu0 %v73
  %384 = vmatprep.subr.mxu0 0.0
  %385 = vmatpush1.msra.mxu0 %v72
  %386 = vmatprep.subr.mxu0 0.0
  %387 = vmatpush1.msra.mxu0 %v71
  %388 = vmatprep.subr.mxu0 0.0
  %389 = vmatpush2.msra.mxu0 0.0
  %390 = vmatprep.subr.mxu0 0.0
  %391 = vmatpush2.msra.mxu0 0.0
  %392 = vmatprep.subr.mxu0 0.0
  %393 = vmatpush2.msra.mxu0 0.0
  %394 = vmatprep.subr.mxu0 0.0
  %395 = vmatpush2.msra.mxu0 0.0
  %396 = vmatprep.subr.mxu0 0.0
  %397 = vmatpush2.msra.mxu0 0.0
  %398 = vmatprep.subr.mxu0 0.0
  %399 = vmatpush2.msra.mxu0 0.0
  %400 = vmatprep.subr.mxu0 0.0
  %401 = vmatpush2.msra.mxu0 0.0
  %402 = vmatprep.subr.mxu0 0.0
  %403 = vmatpush2.msra.mxu0 0.0
  %404 = vmatprep.subr.mxu0 0.0
  %405 = vmatpush2.msra.mxu0 0.0
  %406 = vmatprep.subr.mxu0 0.0
  %407 = vmatpush2.msra.mxu0 0.0
  %408 = vmatprep.subr.mxu0 0.0
  %409 = vmatpush2.msra.mxu0 0.0
  %410 = vmatprep.subr.mxu0 0.0
  %411 = vmatpush2.msra.mxu0 0.0
  %412 = vmatprep.subr.mxu0 0.0
  %413 = vmatpush2.msra.mxu0 0.0
  %414 = vmatprep.subr.mxu0 0.0
  %415 = vmatpush2.msra.mxu0 0.0
  %416 = vmatprep.subr.mxu0 0.0
  %417 = vmatpush2.msra.mxu0 0.0
  %418 = vmatprep.subr.mxu0 0.0
  %419 = vmatpush2.msra.mxu0 0.0
  %420 = vmatprep.mubr.f32.mxu0 0.0
  %421 = vmatmul.mubr.f32.gmra.mxu0 %v355
  %v422 = vpop.f32.mrf.mxu0
  %v423 = vadd.f32 0.0, %v422
  %v424 = vpop.f32.mrf.mxu0
  %425 = vdwg.mxu0
  %v426 = vmul.f32 %v423, %v423
  %427 = vadd.xlane.f32.xlu0 %v426
  %v428 = vpop.xlane.xlu0 %427
  %v429 = vrcp.pop %v428
  %v430 = vmul.f32 %v347, %v429
  %v431 = vmul.f32 %v423, %v430
  %432 = vmatprep.subr.mxu0 0.0
  %433 = vmatpush1.msra.mxu0 %v118
  %434 = vmatprep.subr.mxu0 0.0
  %435 = vmatpush1.msra.mxu0 %v117
  %436 = vmatprep.subr.mxu0 0.0
  %437 = vmatpush1.msra.mxu0 %v116
  %438 = vmatprep.subr.mxu0 0.0
  %439 = vmatpush1.msra.mxu0 %v115
  %440 = vmatprep.subr.mxu0 0.0
  %441 = vmatpush1.msra.mxu0 %v114
  %442 = vmatprep.subr.mxu0 0.0
  %443 = vmatpush1.msra.mxu0 %v113
  %444 = vmatprep.subr.mxu0 0.0
  %445 = vmatpush1.msra.mxu0 %v112
  %446 = vmatprep.subr.mxu0 0.0
  %447 = vmatpush1.msra.mxu0 %v111
  %448 = vmatprep.subr.mxu0 0.0
  %449 = vmatpush1.msra.mxu0 %v110
  %450 = vmatprep.subr.mxu0 0.0
  %451 = vmatpush1.msra.mxu0 %v109
  %452 = vmatprep.subr.mxu0 0.0
  %453 = vmatpush1.msra.mxu0 %v108
  %454 = vmatprep.subr.mxu0 0.0
  %455 = vmatpush1.msra.mxu0 %v107
  %456 = vmatprep.subr.mxu0 0.0
  %457 = vmatpush1.msra.mxu0 %v106
  %458 = vmatprep.subr.mxu0 0.0
  %459 = vmatpush1.msra.mxu0 %v105
  %460 = vmatprep.subr.mxu0 0.0
  %461 = vmatpush1.msra.mxu0 %v104
  %462 = vmatprep.subr.mxu0 0.0
  %463 = vmatpush1.msra.mxu0 %v103
  %464 = vmatprep.subr.mxu0 0.0
  %465 = vmatpush2.msra.mxu0 0.0
  %466 = vmatprep.subr.mxu0 0.0
  %467 = vmatpush2.msra.mxu0 0.0
  %468 = vmatprep.subr.mxu0 0.0
  %469 = vmatpush2.msra.mxu0 0.0
  %470 = vmatprep.subr.mxu0 0.0
  %471 = vmatpush2.msra.mxu0 0.0
  %472 = vmatprep.subr.mxu0 0.0
  %473 = vmatpush2.msra.mxu0 0.0
  %474 = vmatprep.subr.mxu0 0.0
  %475 = vmatpush2.msra.mxu0 0.0
  %476 = vmatprep.subr.mxu0 0.0
  %477 = vmatpush2.msra.mxu0 0.0
  %478 = vmatprep.subr.mxu0 0.0
  %479 = vmatpush2.msra.mxu0 0.0
  %480 = vmatprep.subr.mxu0 0.0
  %481 = vmatpush2.msra.mxu0 0.0
  %482 = vmatprep.subr.mxu0 0.0
  %483 = vmatpush2.msra.mxu0 0.0
  %484 = vmatprep.subr.mxu0 0.0
  %485 = vmatpush2.msra.mxu0 0.0
  %486 = vmatprep.subr.mxu0 0.0
  %487 = vmatpush2.msra.mxu0 0.0
  %488 = vmatprep.subr.mxu0 0.0
  %489 = vmatpush2.msra.mxu0 0.0
  %490 = vmatprep.subr.mxu0 0.0
  %491 = vmatpush2.msra.mxu0 0.0
  %492 = vmatprep.subr.mxu0 0.0
  %493 = vmatpush2.msra.mxu0 0.0
  %494 = vmatprep.subr.mxu0 0.0
  %495 = vmatpush2.msra.mxu0 0.0
  %496 = vmatprep.mubr.f32.mxu0 0.0
  %497 = vmatmul.mubr.f32.gmra.mxu0 %v431
  %v498 = vpop.f32.mrf.mxu0
  %v499 = vadd.f32 0.0, %v498
  %v500 = vpop.f32.mrf.mxu0
  %501 = vdwg.mxu0
  %v502 = vadd.f32 %v167, %v499
  %503 = vmatprep.subr.mxu0 %v165
  %504 = vmatpush1.msra.mxu0 %v164
  %505 = vmatprep.subr.mxu0 %v162
  %506 = vmatpush1.msra.mxu0 %v161
  %507 = vmatprep.subr.mxu0 %v159
  %508 = vmatpush1.msra.mxu0 %v158
  %509 = vmatprep.subr.mxu0 %v156
  %510 = vmatpush1.msra.mxu0 %v155
  %511 = vmatprep.subr.mxu0 %v153
  %512 = vmatpush1.msra.mxu0 %v152
  %513 = vmatprep.subr.mxu0 %v150
  %514 = vmatpush1.msra.mxu0 %v149
  %515 = vmatprep.subr.mxu0 %v147
  %516 = vmatpush1.msra.mxu0 %v146
  %517 = vmatprep.subr.mxu0 %v144
  %518 = vmatpush1.msra.mxu0 %v143
  %519 = vmatprep.subr.mxu0 %v141
  %520 = vmatpush1.msra.mxu0 %v140
  %521 = vmatprep.subr.mxu0 %v138
  %522 = vmatpush1.msra.mxu0 %v137
  %523 = vmatprep.subr.mxu0 %v135
  %524 = vmatpush1.msra.mxu0 %v134
  %525 = vmatprep.subr.mxu0 %v132
  %526 = vmatpush1.msra.mxu0 %v131
  %527 = vmatprep.subr.mxu0 %v129
  %528 = vmatpush1.msra.mxu0 %v128
  %529 = vmatprep.subr.mxu0 %v126
  %530 = vmatpush1.msra.mxu0 %v125
  %531 = vmatprep.subr.mxu0 %v123
  %532 = vmatpush1.msra.mxu0 %v122
  %533 = vmatprep.subr.mxu0 %v120
  %534 = vmatpush1.msra.mxu0 %v119
  %535 = vmatprep.subr.mxu0 0.0
  %536 = vmatpush2.msra.mxu0 0.0
  %537 = vmatprep.subr.mxu0 0.0
  %538 = vmatpush2.msra.mxu0 0.0
  %539 = vmatprep.subr.mxu0 0.0
  %540 = vmatpush2.msra.mxu0 0.0
  %541 = vmatprep.subr.mxu0 0.0
  %542 = vmatpush2.msra.mxu0 0.0
  %543 = vmatprep.subr.mxu0 0.0
  %544 = vmatpush2.msra.mxu0 0.0
  %545 = vmatprep.subr.mxu0 0.0
  %546 = vmatpush2.msra.mxu0 0.0
  %547 = vmatprep.subr.mxu0 0.0
  %548 = vmatpush2.msra.mxu0 0.0
  %549 = vmatprep.subr.mxu0 0.0
  %550 = vmatpush2.msra.mxu0 0.0
  %551 = vmatprep.subr.mxu0 0.0
  %552 = vmatpush2.msra.mxu0 0.0
  %553 = vmatprep.subr.mxu0 0.0
  %554 = vmatpush2.msra.mxu0 0.0
  %555 = vmatprep.subr.mxu0 0.0
  %556 = vmatpush2.msra.mxu0 0.0
  %557 = vmatprep.subr.mxu0 0.0
  %558 = vmatpush2.msra.mxu0 0.0
  %559 = vmatprep.subr.mxu0 0.0
  %560 = vmatpush2.msra.mxu0 0.0
  %561 = vmatprep.subr.mxu0 0.0
  %562 = vmatpush2.msra.mxu0 0.0
  %563 = vmatprep.subr.mxu0 0.0
  %564 = vmatpush2.msra.mxu0 0.0
  %565 = vmatprep.subr.mxu0 0.0
  %566 = vmatpush2.msra.mxu0 0.0
  %567 = vmatprep.mubr.f32.mxu0 0.0
  %568 = vmatmul.mubr.f32.gmra.mxu0 %v431
  %v569 = vpop.f32.mrf.mxu0
  %v570 = vadd.f32 0.0, %v569
  %v571 = vpop.f32.mrf.mxu0
  %v572 = vadd.f32 0.0, %v571
  %573 = vdwg.mxu0
  %574 = vmatprep.subr.mxu0 0.0
  %575 = vmatpush1.msra.mxu0 %v166
  %576 = vmatprep.subr.mxu0 0.0
  %577 = vmatpush1.msra.mxu0 %v163
  %578 = vmatprep.subr.mxu0 0.0
  %579 = vmatpush1.msra.mxu0 %v160
  %580 = vmatprep.subr.mxu0 0.0
  %581 = vmatpush1.msra.mxu0 %v157
  %582 = vmatprep.subr.mxu0 0.0
  %583 = vmatpush1.msra.mxu0 %v154
  %584 = vmatprep.subr.mxu0 0.0
  %585 = vmatpush1.msra.mxu0 %v151
  %586 = vmatprep.subr.mxu0 0.0
  %587 = vmatpush1.msra.mxu0 %v148
  %588 = vmatprep.subr.mxu0 0.0
  %589 = vmatpush1.msra.mxu0 %v145
  %590 = vmatprep.subr.mxu0 0.0
  %591 = vmatpush1.msra.mxu0 %v142
  %592 = vmatprep.subr.mxu0 0.0
  %593 = vmatpush1.msra.mxu0 %v139
  %594 = vmatprep.subr.mxu0 0.0
  %595 = vmatpush1.msra.mxu0 %v136
  %596 = vmatprep.subr.mxu0 0.0
  %597 = vmatpush1.msra.mxu0 %v133
  %598 = vmatprep.subr.mxu0 0.0
  %599 = vmatpush1.msra.mxu0 %v130
  %600 = vmatprep.subr.mxu0 0.0
  %601 = vmatpush1.msra.mxu0 %v127
  %602 = vmatprep.subr.mxu0 0.0
  %603 = vmatpush1.msra.mxu0 %v124
  %604 = vmatprep.subr.mxu0 0.0
  %605 = vmatpush1.msra.mxu0 %v121
  %606 = vmatprep.subr.mxu0 0.0
  %607 = vmatpush2.msra.mxu0 0.0
  %608 = vmatprep.subr.mxu0 0.0
  %609 = vmatpush2.msra.mxu0 0.0
  %610 = vmatprep.subr.mxu0 0.0
  %611 = vmatpush2.msra.mxu0 0.0
  %612 = vmatprep.subr.mxu0 0.0
  %613 = vmatpush2.msra.mxu0 0.0
  %614 = vmatprep.subr.mxu0 0.0
  %615 = vmatpush2.msra.mxu0 0.0
  %616 = vmatprep.subr.mxu0 0.0
  %617 = vmatpush2.msra.mxu0 0.0
  %618 = vmatprep.subr.mxu0 0.0
  %619 = vmatpush2.msra.mxu0 0.0
  %620 = vmatprep.subr.mxu0 0.0
  %621 = vmatpush2.msra.mxu0 0.0
  %622 = vmatprep.subr.mxu0 0.0
  %623 = vmatpush2.msra.mxu0 0.0
  %624 = vmatprep.subr.mxu0 0.0
  %625 = vmatpush2.msra.mxu0 0.0
  %626 = vmatprep.subr.mxu0 0.0
  %627 = vmatpush2.msra.mxu0 0.0
  %628 = vmatprep.subr.mxu0 0.0
  %629 = vmatpush2.msra.mxu0 0.0
  %630 = vmatprep.subr.mxu0 0.0
  %631 = vmatpush2.msra.mxu0 0.0
  %632 = vmatprep.subr.mxu0 0.0
  %633 = vmatpush2.msra.mxu0 0.0
  %634 = vmatprep.subr.mxu0 0.0
  %635 = vmatpush2.msra.mxu0 0.0
  %636 = vmatprep.subr.mxu0 0.0
  %637 = vmatpush2.msra.mxu0 0.0
  %638 = vmatprep.mubr.f32.mxu0 0.0
  %639 = vmatmul.mubr.f32.gmra.mxu0 %v431
  %v640 = vpop.f32.mrf.mxu0
  %v641 = vadd.f32 0.0, %v640
  %v642 = vpop.f32.mrf.mxu0
  %643 = vdwg.mxu0
  %v644 = vadd.f32 %v237, %v570
  %v645 = vadd.f32 %v239, %v572
  %v646 = vadd.f32 %v320, %v641
  %v647 = vsub.f32 %v644, %v645
  %v648 = vmul.f32 %v647, %v334
  %v649 = vsub.f32 %v646, %v645
  %v650 = vmul.f32 %v336, %v649
  %v651 = vsub.f32 %v648, %v650
  %v652 = vmul.f32 %v651, 0.16666667
  %653 = vmatprep.subr.mxu0 0.0
  %654 = vmatpush1.msra.mxu0 %v102
  %655 = vmatprep.subr.mxu0 0.0
  %656 = vmatpush1.msra.mxu0 %v101
  %657 = vmatprep.subr.mxu0 0.0
  %658 = vmatpush1.msra.mxu0 %v100
  %659 = vmatprep.subr.mxu0 0.0
  %660 = vmatpush1.msra.mxu0 %v99
  %661 = vmatprep.subr.mxu0 0.0
  %662 = vmatpush1.msra.mxu0 %v98
  %663 = vmatprep.subr.mxu0 0.0
  %664 = vmatpush1.msra.mxu0 %v97
  %665 = vmatprep.subr.mxu0 0.0
  %666 = vmatpush1.msra.mxu0 %v96
  %667 = vmatprep.subr.mxu0 0.0
  %668 = vmatpush1.msra.mxu0 %v95
  %669 = vmatprep.subr.mxu0 0.0
  %670 = vmatpush1.msra.mxu0 %v94
  %671 = vmatprep.subr.mxu0 0.0
  %672 = vmatpush1.msra.mxu0 %v93
  %673 = vmatprep.subr.mxu0 0.0
  %674 = vmatpush1.msra.mxu0 %v92
  %675 = vmatprep.subr.mxu0 0.0
  %676 = vmatpush1.msra.mxu0 %v91
  %677 = vmatprep.subr.mxu0 0.0
  %678 = vmatpush1.msra.mxu0 %v90
  %679 = vmatprep.subr.mxu0 0.0
  %680 = vmatpush1.msra.mxu0 %v89
  %681 = vmatprep.subr.mxu0 0.0
  %682 = vmatpush1.msra.mxu0 %v88
  %683 = vmatprep.subr.mxu0 0.0
  %684 = vmatpush1.msra.mxu0 %v87
  %685 = vmatprep.subr.mxu0 0.0
  %686 = vmatpush2.msra.mxu0 0.0
  %687 = vmatprep.subr.mxu0 0.0
  %688 = vmatpush2.msra.mxu0 0.0
  %689 = vmatprep.subr.mxu0 0.0
  %690 = vmatpush2.msra.mxu0 0.0
  %691 = vmatprep.subr.mxu0 0.0
  %692 = vmatpush2.msra.mxu0 0.0
  %693 = vmatprep.subr.mxu0 0.0
  %694 = vmatpush2.msra.mxu0 0.0
  %695 = vmatprep.subr.mxu0 0.0
  %696 = vmatpush2.msra.mxu0 0.0
  %697 = vmatprep.subr.mxu0 0.0
  %698 = vmatpush2.msra.mxu0 0.0
  %699 = vmatprep.subr.mxu0 0.0
  %700 = vmatpush2.msra.mxu0 0.0
  %701 = vmatprep.subr.mxu0 0.0
  %702 = vmatpush2.msra.mxu0 0.0
  %703 = vmatprep.subr.mxu0 0.0
  %704 = vmatpush2.msra.mxu0 0.0
  %705 = vmatprep.subr.mxu0 0.0
  %706 = vmatpush2.msra.mxu0 0.0
  %707 = vmatprep.subr.mxu0 0.0
  %708 = vmatpush2.msra.mxu0 0.0
  %709 = vmatprep.subr.mxu0 0.0
  %710 = vmatpush2.msra.mxu0 0.0
  %711 = vmatprep.subr.mxu0 0.0
  %712 = vmatpush2.msra.mxu0 0.0
  %713 = vmatprep.subr.mxu0 0.0
  %714 = vmatpush2.msra.mxu0 0.0
  %715 = vmatprep.subr.mxu0 0.0
  %716 = vmatpush2.msra.mxu0 0.0
  %717 = vmatprep.mubr.f32.mxu0 0.0
  %718 = vmatmul.mubr.f32.gmra.mxu0 %v652
  %v719 = vpop.f32.mrf.mxu0
  %v720 = vadd.f32 0.0, %v719
  %v721 = vpop.f32.mrf.mxu0
  %722 = vdwg.mxu0
  %v723 = vmul.f32 %v720, %v720
  %724 = vadd.xlane.f32.xlu0 %v723
  %v725 = vpop.xlane.xlu0 %724
  %v726 = vrcp.pop %v725
  %v727 = vmul.f32 %v347, %v726
  %v728 = vmul.f32 %v720, %v727
  %729 = vmatprep.subr.mxu0 0.0
  %730 = vmatpush1.msra.mxu0 %v118
  %731 = vmatprep.subr.mxu0 0.0
  %732 = vmatpush1.msra.mxu0 %v117
  %733 = vmatprep.subr.mxu0 0.0
  %734 = vmatpush1.msra.mxu0 %v116
  %735 = vmatprep.subr.mxu0 0.0
  %736 = vmatpush1.msra.mxu0 %v115
  %737 = vmatprep.subr.mxu0 0.0
  %738 = vmatpush1.msra.mxu0 %v114
  %739 = vmatprep.subr.mxu0 0.0
  %740 = vmatpush1.msra.mxu0 %v113
  %741 = vmatprep.subr.mxu0 0.0
  %742 = vmatpush1.msra.mxu0 %v112
  %743 = vmatprep.subr.mxu0 0.0
  %744 = vmatpush1.msra.mxu0 %v111
  %745 = vmatprep.subr.mxu0 0.0
  %746 = vmatpush1.msra.mxu0 %v110
  %747 = vmatprep.subr.mxu0 0.0
  %748 = vmatpush1.msra.mxu0 %v109
  %749 = vmatprep.subr.mxu0 0.0
  %750 = vmatpush1.msra.mxu0 %v108
  %751 = vmatprep.subr.mxu0 0.0
  %752 = vmatpush1.msra.mxu0 %v107
  %753 = vmatprep.subr.mxu0 0.0
  %754 = vmatpush1.msra.mxu0 %v106
  %755 = vmatprep.subr.mxu0 0.0
  %756 = vmatpush1.msra.mxu0 %v105
  %757 = vmatprep.subr.mxu0 0.0
  %758 = vmatpush1.msra.mxu0 %v104
  %759 = vmatprep.subr.mxu0 0.0
  %760 = vmatpush1.msra.mxu0 %v103
  %761 = vmatprep.subr.mxu0 0.0
  %762 = vmatpush2.msra.mxu0 0.0
  %763 = vmatprep.subr.mxu0 0.0
  %764 = vmatpush2.msra.mxu0 0.0
  %765 = vmatprep.subr.mxu0 0.0
  %766 = vmatpush2.msra.mxu0 0.0
  %767 = vmatprep.subr.mxu0 0.0
  %768 = vmatpush2.msra.mxu0 0.0
  %769 = vmatprep.subr.mxu0 0.0
  %770 = vmatpush2.msra.mxu0 0.0
  %771 = vmatprep.subr.mxu0 0.0
  %772 = vmatpush2.msra.mxu0 0.0
  %773 = vmatprep.subr.mxu0 0.0
  %774 = vmatpush2.msra.mxu0 0.0
  %775 = vmatprep.subr.mxu0 0.0
  %776 = vmatpush2.msra.mxu0 0.0
  %777 = vmatprep.subr.mxu0 0.0
  %778 = vmatpush2.msra.mxu0 0.0
  %779 = vmatprep.subr.mxu0 0.0
  %780 = vmatpush2.msra.mxu0 0.0
  %781 = vmatprep.subr.mxu0 0.0
  %782 = vmatpush2.msra.mxu0 0.0
  %783 = vmatprep.subr.mxu0 0.0
  %784 = vmatpush2.msra.mxu0 0.0
  %785 = vmatprep.subr.mxu0 0.0
  %786 = vmatpush2.msra.mxu0 0.0
  %787 = vmatprep.subr.mxu0 0.0
  %788 = vmatpush2.msra.mxu0 0.0
  %789 = vmatprep.subr.mxu0 0.0
  %790 = vmatpush2.msra.mxu0 0.0
  %791 = vmatprep.subr.mxu0 0.0
  %792 = vmatpush2.msra.mxu0 0.0
  %793 = vmatprep.mubr.f32.mxu0 0.0
  %794 = vmatmul.mubr.f32.gmra.mxu0 %v728
  %v795 = vpop.f32.mrf.mxu0
  %v796 = vadd.f32 0.0, %v795
  %v797 = vpop.f32.mrf.mxu0
  %798 = vdwg.mxu0
  %v799 = vadd.f32 %v168, %v796
  %800 = vmatprep.subr.mxu0 %v165
  %801 = vmatpush1.msra.mxu0 %v164
  %802 = vmatprep.subr.mxu0 %v162
  %803 = vmatpush1.msra.mxu0 %v161
  %804 = vmatprep.subr.mxu0 %v159
  %805 = vmatpush1.msra.mxu0 %v158
  %806 = vmatprep.subr.mxu0 %v156
  %807 = vmatpush1.msra.mxu0 %v155
  %808 = vmatprep.subr.mxu0 %v153
  %809 = vmatpush1.msra.mxu0 %v152
  %810 = vmatprep.subr.mxu0 %v150
  %811 = vmatpush1.msra.mxu0 %v149
  %812 = vmatprep.subr.mxu0 %v147
  %813 = vmatpush1.msra.mxu0 %v146
  %814 = vmatprep.subr.mxu0 %v144
  %815 = vmatpush1.msra.mxu0 %v143
  %816 = vmatprep.subr.mxu0 %v141
  %817 = vmatpush1.msra.mxu0 %v140
  %818 = vmatprep.subr.mxu0 %v138
  %819 = vmatpush1.msra.mxu0 %v137
  %820 = vmatprep.subr.mxu0 %v135
  %821 = vmatpush1.msra.mxu0 %v134
  %822 = vmatprep.subr.mxu0 %v132
  %823 = vmatpush1.msra.mxu0 %v131
  %824 = vmatprep.subr.mxu0 %v129
  %825 = vmatpush1.msra.mxu0 %v128
  %826 = vmatprep.subr.mxu0 %v126
  %827 = vmatpush1.msra.mxu0 %v125
  %828 = vmatprep.subr.mxu0 %v123
  %829 = vmatpush1.msra.mxu0 %v122
  %830 = vmatprep.subr.mxu0 %v120
  %831 = vmatpush1.msra.mxu0 %v119
  %832 = vmatprep.subr.mxu0 0.0
  %833 = vmatpush2.msra.mxu0 0.0
  %834 = vmatprep.subr.mxu0 0.0
  %835 = vmatpush2.msra.mxu0 0.0
  %836 = vmatprep.subr.mxu0 0.0
  %837 = vmatpush2.msra.mxu0 0.0
  %838 = vmatprep.subr.mxu0 0.0
  %839 = vmatpush2.msra.mxu0 0.0
  %840 = vmatprep.subr.mxu0 0.0
  %841 = vmatpush2.msra.mxu0 0.0
  %842 = vmatprep.subr.mxu0 0.0
  %843 = vmatpush2.msra.mxu0 0.0
  %844 = vmatprep.subr.mxu0 0.0
  %845 = vmatpush2.msra.mxu0 0.0
  %846 = vmatprep.subr.mxu0 0.0
  %847 = vmatpush2.msra.mxu0 0.0
  %848 = vmatprep.subr.mxu0 0.0
  %849 = vmatpush2.msra.mxu0 0.0
  %850 = vmatprep.subr.mxu0 0.0
  %851 = vmatpush2.msra.mxu0 0.0
  %852 = vmatprep.subr.mxu0 0.0
  %853 = vmatpush2.msra.mxu0 0.0
  %854 = vmatprep.subr.mxu0 0.0
  %855 = vmatpush2.msra.mxu0 0.0
  %856 = vmatprep.subr.mxu0 0.0
  %857 = vmatpush2.msra.mxu0 0.0
  %858 = vmatprep.subr.mxu0 0.0
  %859 = vmatpush2.msra.mxu0 0.0
  %860 = vmatprep.subr.mxu0 0.0
  %861 = vmatpush2.msra.mxu0 0.0
  %862 = vmatprep.subr.mxu0 0.0
  %863 = vmatpush2.msra.mxu0 0.0
  %864 = vmatprep.mubr.f32.mxu0 0.0
  %865 = vmatmul.mubr.f32.gmra.mxu0 %v728
  %v866 = vpop.f32.mrf.mxu0
  %v867 = vadd.f32 0.0, %v866
  %v868 = vpop.f32.mrf.mxu0
  %v869 = vadd.f32 0.0, %v868
  %870 = vdwg.mxu0
  %871 = vmatprep.subr.mxu0 0.0
  %872 = vmatpush1.msra.mxu0 %v166
  %873 = vmatprep.subr.mxu0 0.0
  %874 = vmatpush1.msra.mxu0 %v163
  %875 = vmatprep.subr.mxu0 0.0
  %876 = vmatpush1.msra.mxu0 %v160
  %877 = vmatprep.subr.mxu0 0.0
  %878 = vmatpush1.msra.mxu0 %v157
  %879 = vmatprep.subr.mxu0 0.0
  %880 = vmatpush1.msra.mxu0 %v154
  %881 = vmatprep.subr.mxu0 0.0
  %882 = vmatpush1.msra.mxu0 %v151
  %883 = vmatprep.subr.mxu0 0.0
  %884 = vmatpush1.msra.mxu0 %v148
  %885 = vmatprep.subr.mxu0 0.0
  %886 = vmatpush1.msra.mxu0 %v145
  %887 = vmatprep.subr.mxu0 0.0
  %888 = vmatpush1.msra.mxu0 %v142
  %889 = vmatprep.subr.mxu0 0.0
  %890 = vmatpush1.msra.mxu0 %v139
  %891 = vmatprep.subr.mxu0 0.0
  %892 = vmatpush1.msra.mxu0 %v136
  %893 = vmatprep.subr.mxu0 0.0
  %894 = vmatpush1.msra.mxu0 %v133
  %895 = vmatprep.subr.mxu0 0.0
  %896 = vmatpush1.msra.mxu0 %v130
  %897 = vmatprep.subr.mxu0 0.0
  %898 = vmatpush1.msra.mxu0 %v127
  %899 = vmatprep.subr.mxu0 0.0
  %900 = vmatpush1.msra.mxu0 %v124
  %901 = vmatprep.subr.mxu0 0.0
  %902 = vmatpush1.msra.mxu0 %v121
  %903 = vmatprep.subr.mxu0 0.0
  %904 = vmatpush2.msra.mxu0 0.0
  %905 = vmatprep.subr.mxu0 0.0
  %906 = vmatpush2.msra.mxu0 0.0
  %907 = vmatprep.subr.mxu0 0.0
  %908 = vmatpush2.msra.mxu0 0.0
  %909 = vmatprep.subr.mxu0 0.0
  %910 = vmatpush2.msra.mxu0 0.0
  %911 = vmatprep.subr.mxu0 0.0
  %912 = vmatpush2.msra.mxu0 0.0
  %913 = vmatprep.subr.mxu0 0.0
  %914 = vmatpush2.msra.mxu0 0.0
  %915 = vmatprep.subr.mxu0 0.0
  %916 = vmatpush2.msra.mxu0 0.0
  %917 = vmatprep.subr.mxu0 0.0
  %918 = vmatpush2.msra.mxu0 0.0
  %919 = vmatprep.subr.mxu0 0.0
  %920 = vmatpush2.msra.mxu0 0.0
  %921 = vmatprep.subr.mxu0 0.0
  %922 = vmatpush2.msra.mxu0 0.0
  %923 = vmatprep.subr.mxu0 0.0
  %924 = vmatpush2.msra.mxu0 0.0
  %925 = vmatprep.subr.mxu0 0.0
  %926 = vmatpush2.msra.mxu0 0.0
  %927 = vmatprep.subr.mxu0 0.0
  %928 = vmatpush2.msra.mxu0 0.0
  %929 = vmatprep.subr.mxu0 0.0
  %930 = vmatpush2.msra.mxu0 0.0
  %931 = vmatprep.subr.mxu0 0.0
  %932 = vmatpush2.msra.mxu0 0.0
  %933 = vmatprep.subr.mxu0 0.0
  %934 = vmatpush2.msra.mxu0 0.0
  %935 = vmatprep.mubr.f32.mxu0 0.0
  %936 = vmatmul.mubr.f32.gmra.mxu0 %v728
  %v937 = vpop.f32.mrf.mxu0
  %v938 = vadd.f32 0.0, %v937
  %v939 = vpop.f32.mrf.mxu0
  %940 = vdwg.mxu0
  %v941 = vadd.f32 %v243, %v867
  %v942 = vadd.f32 %v245, %v869
  %v943 = vadd.f32 %v325, %v938
  %v944 = vsub.f32 %v644, %v646
  %v945 = vsub.f32 %v942, %v943
  %v946 = vmul.f32 %v944, %v945
  %v947 = vsub.f32 %v941, %v943
  %v948 = vsub.f32 %v645, %v646
  %v949 = vmul.f32 %v947, %v948
  %v950 = vsub.f32 %v946, %v949
  %v951 = vmul.f32 %v950, 0.16666667
  %952 = vmatprep.subr.mxu0 0.0
  %953 = vmatpush1.msra.mxu0 %v86
  %954 = vmatprep.subr.mxu0 0.0
  %955 = vmatpush1.msra.mxu0 %v85
  %956 = vmatprep.subr.mxu0 0.0
  %957 = vmatpush1.msra.mxu0 %v84
  %958 = vmatprep.subr.mxu0 0.0
  %959 = vmatpush1.msra.mxu0 %v83
  %960 = vmatprep.subr.mxu0 0.0
  %961 = vmatpush1.msra.mxu0 %v82
  %962 = vmatprep.subr.mxu0 0.0
  %963 = vmatpush1.msra.mxu0 %v81
  %964 = vmatprep.subr.mxu0 0.0
  %965 = vmatpush1.msra.mxu0 %v80
  %966 = vmatprep.subr.mxu0 0.0
  %967 = vmatpush1.msra.mxu0 %v79
  %968 = vmatprep.subr.mxu0 0.0
  %969 = vmatpush1.msra.mxu0 %v78
  %970 = vmatprep.subr.mxu0 0.0
  %971 = vmatpush1.msra.mxu0 %v77
  %972 = vmatprep.subr.mxu0 0.0
  %973 = vmatpush1.msra.mxu0 %v76
  %974 = vmatprep.subr.mxu0 0.0
  %975 = vmatpush1.msra.mxu0 %v75
  %976 = vmatprep.subr.mxu0 0.0
  %977 = vmatpush1.msra.mxu0 %v74
  %978 = vmatprep.subr.mxu0 0.0
  %979 = vmatpush1.msra.mxu0 %v73
  %980 = vmatprep.subr.mxu0 0.0
  %981 = vmatpush1.msra.mxu0 %v72
  %982 = vmatprep.subr.mxu0 0.0
  %983 = vmatpush1.msra.mxu0 %v71
  %984 = vmatprep.subr.mxu0 0.0
  %985 = vmatpush2.msra.mxu0 0.0
  %986 = vmatprep.subr.mxu0 0.0
  %987 = vmatpush2.msra.mxu0 0.0
  %988 = vmatprep.subr.mxu0 0.0
  %989 = vmatpush2.msra.mxu0 0.0
  %990 = vmatprep.subr.mxu0 0.0
  %991 = vmatpush2.msra.mxu0 0.0
  %992 = vmatprep.subr.mxu0 0.0
  %993 = vmatpush2.msra.mxu0 0.0
  %994 = vmatprep.subr.mxu0 0.0
  %995 = vmatpush2.msra.mxu0 0.0
  %996 = vmatprep.subr.mxu0 0.0
  %997 = vmatpush2.msra.mxu0 0.0
  %998 = vmatprep.subr.mxu0 0.0
  %999 = vmatpush2.msra.mxu0 0.0
  %1000 = vmatprep.subr.mxu0 0.0
  %1001 = vmatpush2.msra.mxu0 0.0
  %1002 = vmatprep.subr.mxu0 0.0
  %1003 = vmatpush2.msra.mxu0 0.0
  %1004 = vmatprep.subr.mxu0 0.0
  %1005 = vmatpush2.msra.mxu0 0.0
  %1006 = vmatprep.subr.mxu0 0.0
  %1007 = vmatpush2.msra.mxu0 0.0
  %1008 = vmatprep.subr.mxu0 0.0
  %1009 = vmatpush2.msra.mxu0 0.0
  %1010 = vmatprep.subr.mxu0 0.0
  %1011 = vmatpush2.msra.mxu0 0.0
  %1012 = vmatprep.subr.mxu0 0.0
  %1013 = vmatpush2.msra.mxu0 0.0
  %1014 = vmatprep.subr.mxu0 0.0
  %1015 = vmatpush2.msra.mxu0 0.0
  %1016 = vmatprep.mubr.f32.mxu0 0.0
  %1017 = vmatmul.mubr.f32.gmra.mxu0 %v951
  %v1018 = vpop.f32.mrf.mxu0
  %v1019 = vadd.f32 0.0, %v1018
  %v1020 = vpop.f32.mrf.mxu0
  %1021 = vdwg.mxu0
  %v1022 = vmul.f32 %v1019, %v1019
  %1023 = vadd.xlane.f32.xlu0 %v1022
  %v1024 = vpop.xlane.xlu0 %1023
  %v1025 = vrcp.pop %v1024
  %v1026 = vmul.f32 %v347, %v1025
  %v1027 = vmul.f32 %v1019, %v1026
  %1028 = vmatprep.subr.mxu0 0.0
  %1029 = vmatpush1.msra.mxu0 %v118
  %1030 = vmatprep.subr.mxu0 0.0
  %1031 = vmatpush1.msra.mxu0 %v117
  %1032 = vmatprep.subr.mxu0 0.0
  %1033 = vmatpush1.msra.mxu0 %v116
  %1034 = vmatprep.subr.mxu0 0.0
  %1035 = vmatpush1.msra.mxu0 %v115
  %1036 = vmatprep.subr.mxu0 0.0
  %1037 = vmatpush1.msra.mxu0 %v114
  %1038 = vmatprep.subr.mxu0 0.0
  %1039 = vmatpush1.msra.mxu0 %v113
  %1040 = vmatprep.subr.mxu0 0.0
  %1041 = vmatpush1.msra.mxu0 %v112
  %1042 = vmatprep.subr.mxu0 0.0
  %1043 = vmatpush1.msra.mxu0 %v111
  %1044 = vmatprep.subr.mxu0 0.0
  %1045 = vmatpush1.msra.mxu0 %v110
  %1046 = vmatprep.subr.mxu0 0.0
  %1047 = vmatpush1.msra.mxu0 %v109
  %1048 = vmatprep.subr.mxu0 0.0
  %1049 = vmatpush1.msra.mxu0 %v108
  %1050 = vmatprep.subr.mxu0 0.0
  %1051 = vmatpush1.msra.mxu0 %v107
  %1052 = vmatprep.subr.mxu0 0.0
  %1053 = vmatpush1.msra.mxu0 %v106
  %1054 = vmatprep.subr.mxu0 0.0
  %1055 = vmatpush1.msra.mxu0 %v105
  %1056 = vmatprep.subr.mxu0 0.0
  %1057 = vmatpush1.msra.mxu0 %v104
  %1058 = vmatprep.subr.mxu0 0.0
  %1059 = vmatpush1.msra.mxu0 %v103
  %1060 = vmatprep.subr.mxu0 0.0
  %1061 = vmatpush2.msra.mxu0 0.0
  %1062 = vmatprep.subr.mxu0 0.0
  %1063 = vmatpush2.msra.mxu0 0.0
  %1064 = vmatprep.subr.mxu0 0.0
  %1065 = vmatpush2.msra.mxu0 0.0
  %1066 = vmatprep.subr.mxu0 0.0
  %1067 = vmatpush2.msra.mxu0 0.0
  %1068 = vmatprep.subr.mxu0 0.0
  %1069 = vmatpush2.msra.mxu0 0.0
  %1070 = vmatprep.subr.mxu0 0.0
  %1071 = vmatpush2.msra.mxu0 0.0
  %1072 = vmatprep.subr.mxu0 0.0
  %1073 = vmatpush2.msra.mxu0 0.0
  %1074 = vmatprep.subr.mxu0 0.0
  %1075 = vmatpush2.msra.mxu0 0.0
  %1076 = vmatprep.subr.mxu0 0.0
  %1077 = vmatpush2.msra.mxu0 0.0
  %1078 = vmatprep.subr.mxu0 0.0
  %1079 = vmatpush2.msra.mxu0 0.0
  %1080 = vmatprep.subr.mxu0 0.0
  %1081 = vmatpush2.msra.mxu0 0.0
  %1082 = vmatprep.subr.mxu0 0.0
  %1083 = vmatpush2.msra.mxu0 0.0
  %1084 = vmatprep.subr.mxu0 0.0
  %1085 = vmatpush2.msra.mxu0 0.0
  %1086 = vmatprep.subr.mxu0 0.0
  %1087 = vmatpush2.msra.mxu0 0.0
  %1088 = vmatprep.subr.mxu0 0.0
  %1089 = vmatpush2.msra.mxu0 0.0
  %1090 = vmatprep.subr.mxu0 0.0
  %1091 = vmatpush2.msra.mxu0 0.0
  %1092 = vmatprep.mubr.f32.mxu0 0.0
  %1093 = vmatmul.mubr.f32.gmra.mxu0 %v1027
  %v1094 = vpop.f32.mrf.mxu0
  %v1095 = vadd.f32 0.0, %v1094
  %v1096 = vpop.f32.mrf.mxu0
  %1097 = vdwg.mxu0
  %v1098 = vadd.f32 %v169, %v1095
  %1099 = vst [vmem:[%s6] sm:$0xff] %v502
  %s1100 = scalar_lea.vmem %s6, 8
  %1101 = vst [vmem:[%s1100] sm:$0xff] %v799
  %s1102 = scalar_lea.vmem %s6, 16
  %1103 = vst [vmem:[%s1102] sm:$0xff] %v1098
  // Predicated region
  $region26: #{forward.1} parent=0 // pred_check
    _
  $region27: #{forward.1} parent=0 // pred_check_branch
    %1105 = sbr.rel (0) target = $region29
  $region28: #{forward.1} parent=0 // pred_region
    _
  $region29: #{forward.1} parent=0 // pred_fallthru
    _
  // Predicated region
  $region30: #{forward.1} parent=0 // pred_check
    _
  $region31: #{forward.1} parent=0 // pred_check_branch
    %1107 = sbr.rel (0) target = $region33
  $region32: #{forward.1} parent=0 // pred_region
    _
  $region33: #{forward.1} parent=0 // pred_fallthru
    _

</llo_original>
